<compile_context>
chip_gen: v7x
topology: tpu7x:2x2x1
jax: 0.10.0
libtpu: 0.0.40
codegen_flags: <defaults>
</compile_context>

<pallas_src>
import math
import numpy as np
import jax
import jax.numpy as jnp
from jax.experimental import pallas as pl
from jax.experimental.pallas import tpu as pltpu

# ----------------------------- module hyper-params --------------------------
EMBED_DIM   = 32
DEPTH       = 2
NUM_HEADS   = 4
NUM_LATENTS = 8
MLP_RATIO   = 1
LN_EPS      = 1e-5
HEAD_DIM    = EMBED_DIM // NUM_HEADS
HIDDEN_DIM  = int(EMBED_DIM * MLP_RATIO)
PACKED      = NUM_LATENTS * EMBED_DIM          # 256 packed lane width (= Tl * E)
assert HIDDEN_DIM == EMBED_DIM, "packed row widths assume mlp_ratio == 1"

# ~10 MiB live VMEM at R=1024 with the packed layout -> fits v5e/v6e/v7x comfortably.
MAX_ROW_BLOCK = 1024


# ------------------------------- small helpers ------------------------------
def _round_up(a, b):
    return -(-a // b) * b


def _gelu_exact(x):
    # matches torch.nn.GELU() (erf formulation)
    return 0.5 * x * (1.0 + jax.lax.erf(x * (1.0 / math.sqrt(2.0))))


def _ln_lane(z, g, b):
    # LayerNorm over the (32-wide) lane axis: one-pass stats + EUP rsqrt.
    mu = jnp.mean(z, axis=-1, keepdims=True)
    ms = jnp.mean(z * z, axis=-1, keepdims=True)
    return (z - mu) * jax.lax.rsqrt(ms - mu * mu + LN_EPS) * g + b


# ---------------------- fused forward kernel (one grid step = R rows) -------
def _fused_kernel(*refs):
    """dim_adjust + DEPTH CrossAttentionBlocks for one block of R (b,s) rows."""
    x_ref, v32_ref, v256_ref, daw_ref, avg_ref = refs[:5]
    blk = refs[5:5 + 3 * DEPTH]
    o_ref = refs[-1]

    avg = avg_ref[...]                               # (P, P) block-diag segmented-mean

    # ---- dim_adjust: Linear(D, E) + LayerNorm(E) + ReLU ---------------------
    # TODO(synk): the (R, 32) e-path still uses 32/128 lanes; packing it too would
    # need a cross-lane redistribution of attn, so it is left unpacked (it is <1/4
    # of the packed latent path's work).
    e = jnp.dot(x_ref[...], daw_ref[...],
                preferred_element_type=jnp.float32) + v32_ref[0:1, :]
    e = _ln_lane(e, v32_ref[1:2, :], v32_ref[2:3, :])
    e = jnp.maximum(e, 0.0)                                             # (R, E)

    # Packed latents: row r of `lat` = the Tl latent vectors of (b,s) row r,
    # concatenated along lanes -> (R, Tl*E).  Starts as the (1, P) parameter row
    # and is broadcast by the first residual add (never materialized separately).
    lat = v256_ref[0:1, :]                                              # (1, P)

    for d in range(DEPTH):                      # static python loop over depth
        w_vo_t, w_m1_bd, w_m2_bd = blk[3 * d:3 * d + 3]
        g1   = v32_ref[3 + 2 * d:4 + 2 * d, :]
        be1  = v32_ref[4 + 2 * d:5 + 2 * d, :]
        b_vo = v256_ref[1 + 5 * d:2 + 5 * d, :]
        g2   = v256_ref[2 + 5 * d:3 + 5 * d, :]
        be2  = v256_ref[3 + 5 * d:4 + 5 * d, :]
        bm1  = v256_ref[4 + 5 * d:5 + 5 * d, :]
        bm2  = v256_ref[5 + 5 * d:6 + 5 * d, :]

        # T == 1 specialization: softmax over a single key is exactly 1, so the
        # attention context for every latent query / head equals the single value
        # vector.  q/k projections + softmax are dead compute; the value- and
        # out-projections are pre-folded into w_vo and tiled x Tl so the result
        # is already in packed-latent layout (no broadcast temporary).
        kv     = _ln_lane(e, g1, be1)                                   # (R, E)
        attn_t = jnp.dot(kv, w_vo_t[...],
                         preferred_element_type=jnp.float32) + b_vo     # (R, P)
        lat    = lat + attn_t                                           # (R, P)

        # norm2 == segmented LayerNorm on the packed layout: per-32-lane-segment
        # mean / mean-square via a block-diagonal averaging matmul (MXU slack),
        # one-pass variance + rsqrt.
        mu = jnp.dot(lat, avg, preferred_element_type=jnp.float32)
        ms = jnp.dot(lat * lat, avg, preferred_element_type=jnp.float32)
        z  = (lat - mu) * jax.lax.rsqrt(ms - mu * mu + LN_EPS) * g2 + be2

        # MLP: Linear -> exact GELU -> Linear with block-diagonal weights.
        h   = jnp.dot(z, w_m1_bd[...], preferred_element_type=jnp.float32) + bm1
        h   = _gelu_exact(h)
        lat = lat + jnp.dot(h, w_m2_bd[...],
                            preferred_element_type=jnp.float32) + bm2

    o_ref[...] = lat                            # lane-dense (R, 256) store


# ----------------------------- full forward pass -----------------------------
def time_aggregator_forward(x, params):
    B = x.shape[0]
    spatial = x.shape[1:-1]
    D = x.shape[-1]
    S = int(np.prod(spatial)) if spatial else 1
    E, Tl, P = EMBED_DIM, NUM_LATENTS, PACKED
    # NOTE: the torch module always unsqueezes a singleton time axis (T == 1);
    # the kernel's dead-code elimination of q/k/softmax relies on that.
    N = B * S

    x2d = x.reshape(N, D).astype(jnp.float32)

    # ---- wrapper-side weight preprocessing (layout / folding only) ----------
    eye_t  = jnp.eye(Tl, dtype=jnp.float32)
    avg_bd = jnp.kron(eye_t, jnp.full((E, E), 1.0 / E, dtype=jnp.float32))  # (P, P)

    vec32_rows  = [params["da_b"], params["da_g"], params["da_beta"]]
    vec256_rows = [params["latents"].reshape(1, P)]
    mats = []
    for p in params["blocks"]:
        w_vo = p["w_in"][:, 2 * E:3 * E] @ p["w_out"]                 # fold V and out proj
        b_vo = p["b_in"][:, 2 * E:3 * E] @ p["w_out"] + p["b_out"]
        vec32_rows  += [p["g1"], p["be1"]]
        vec256_rows += [jnp.tile(b_vo,      (1, Tl)),
                        jnp.tile(p["g2"],   (1, Tl)),
                        jnp.tile(p["be2"],  (1, Tl)),
                        jnp.tile(p["b_m1"], (1, Tl)),
                        jnp.tile(p["b_m2"], (1, Tl))]
        mats += [jnp.tile(w_vo, (1, Tl)),        # (E, P)  attn lands in packed layout
                 jnp.kron(eye_t, p["w_m1"]),     # (P, P)  block-diagonal
                 jnp.kron(eye_t, p["w_m2"])]     # (P, P)  block-diagonal

    def _pack_rows(rows, width):
        n = len(rows)
        pad = _round_up(n, 8) - n
        if pad:
            rows = rows + [jnp.zeros((pad, width), jnp.float32)]
        return jnp.concatenate(rows, axis=0)

    vec32  = _pack_rows(vec32_rows, E)           # (8,  32)
    vec256 = _pack_rows(vec256_rows, P)          # (16, 256)

    # ---- row blocking: >= 2 grid steps whenever there is enough work to split
    # (v7x megacore), block rows a multiple of 8, capped for VMEM.
    if N < 16:
        R, Npad = N, N
    else:
        R = min(MAX_ROW_BLOCK, _round_up(pl.cdiv(N, 2), 8))
        Npad = _round_up(N, R)
    if Npad != N:
        x2d = jnp.pad(x2d, ((0, Npad - N), (0, 0)))   # padded rows discarded below

    in_specs = [pl.BlockSpec((R, D), lambda i: (i, 0)),
                pl.BlockSpec(vec32.shape, lambda i: (0, 0)),
                pl.BlockSpec(vec256.shape, lambda i: (0, 0)),
                pl.BlockSpec(params["da_w"].shape, lambda i: (0, 0)),
                pl.BlockSpec(avg_bd.shape, lambda i: (0, 0))]
    in_specs += [pl.BlockSpec(m.shape, lambda i: (0, 0)) for m in mats]

    out = pl.pallas_call(
        _fused_kernel,
        out_shape=jax.ShapeDtypeStruct((Npad, P), jnp.float32),
        grid=(Npad // R,),
        in_specs=in_specs,
        out_specs=pl.BlockSpec((R, P), lambda i: (i, 0)),
        compiler_params=pltpu.CompilerParams(
            dimension_semantics=("parallel",),        # independent row blocks
            vmem_limit_bytes=32 * 1024 * 1024),       # covers v5e's 16 MiB default
    )(x2d, vec32, vec256, params["da_w"], avg_bd, *mats)

    # (Npad, Tl*E) row-major == (Npad, Tl, E) row-major: contiguous, free reshape.
    lat = out[:N].reshape((B,) + spatial + (Tl, E))
    ns = len(spatial)
    perm = [0, ns + 1] + list(range(1, ns + 1)) + [ns + 2]
    return jnp.transpose(lat, perm)               # (B, Tl, *spatial, E)


# --------------------------- pure-JAX reference ------------------------------
# Full multi-head attention math (q/k/softmax included) -- validates that the
# T==1 specialization, the Wv@Wo fold and the packed/segmented-LN rewrites in
# the kernel are numerically equivalent.
def _layernorm_ref(z, g, b, eps):
    mu  = jnp.mean(z, axis=-1, keepdims=True)
    var = jnp.mean((z - mu) ** 2, axis=-1, keepdims=True)
    return (z - mu) / jnp.sqrt(var + eps) * g + b


def reference_forward(x, params):
    B = x.shape[0]
    spatial = x.shape[1:-1]
    D = x.shape[-1]
    S = int(np.prod(spatial)) if spatial else 1
    T = 1
    E, Tl = EMBED_DIM, NUM_LATENTS

    y = x.reshape(B * T * S, D) @ params["da_w"] + params["da_b"]
    y = _layernorm_ref(y, params["da_g"], params["da_beta"], LN_EPS)
    y = jnp.maximum(y, 0.0)
    x_flat = jnp.transpose(y.reshape(B, T, S, E), (0, 2, 1, 3)).reshape(B * S, T, E)

    lat = jnp.broadcast_to(params["latents"][None], (B * S, Tl, E))
    for p in params["blocks"]:
        q_in  = _layernorm_ref(lat, p["g1"], p["be1"], LN_EPS)
        kv_in = _layernorm_ref(x_flat, p["g1"], p["be1"], LN_EPS)
        q = q_in @ p["w_in"][:, :E] + p["b_in"][:, :E]
        k = kv_in @ p["w_in"][:, E:2 * E] + p["b_in"][:, E:2 * E]
        v = kv_in @ p["w_in"][:, 2 * E:] + p["b_in"][:, 2 * E:]
        qh = q.reshape(B * S, Tl, NUM_HEADS, HEAD_DIM)
        kh = k.reshape(B * S, T, NUM_HEADS, HEAD_DIM)
        vh = v.reshape(B * S, T, NUM_HEADS, HEAD_DIM)
        s = jnp.einsum("bqhd,bkhd->bhqk", qh, kh) / math.sqrt(HEAD_DIM)
        pr = jax.nn.softmax(s, axis=-1)
        ctx = jnp.einsum("bhqk,bkhd->bqhd", pr, vh).reshape(B * S, Tl, E)
        attn = ctx @ p["w_out"] + p["b_out"]
        lat1 = lat + attn
        z = _layernorm_ref(lat1, p["g2"], p["be2"], LN_EPS)
        h1 = _gelu_exact(z @ p["w_m1"] + p["b_m1"])
        lat = lat1 + (h1 @ p["w_m2"] + p["b_m2"])

    latf = lat.reshape((B,) + spatial + (Tl, E))
    ns = len(spatial)
    perm = [0, ns + 1] + list(range(1, ns + 1)) + [ns + 2]
    return jnp.transpose(latf, perm)


# --------------------------- deterministic params ----------------------------
def init_params(key, in_dim):
    E = EMBED_DIM
    H = HIDDEN_DIM
    keys = iter(jax.random.split(key, 8 + 16 * DEPTH))

    def nrm(shape, std):
        return jax.random.normal(next(keys), shape, jnp.float32) * std

    params = {
        "latents": jax.random.normal(next(keys), (NUM_LATENTS, E), jnp.float32),
        "da_w":    nrm((in_dim, E), 0.05),
        "da_b":    nrm((1, E), 0.02),
        "da_g":    1.0 + nrm((1, E), 0.02),
        "da_beta": nrm((1, E), 0.02),
        "blocks":  [],
    }
    for _ in range(DEPTH):
        params["blocks"].append({
            "g1":    1.0 + nrm((1, E), 0.02),
            "be1":   nrm((1, E), 0.02),
            "w_in":  nrm((E, 3 * E), 0.05),   # q|k|v packed (pre-transposed: y = x @ W)
            "b_in":  nrm((1, 3 * E), 0.02),
            "w_out": nrm((E, E), 0.05),
            "b_out": nrm((1, E), 0.02),
            "g2":    1.0 + nrm((1, E), 0.02),
            "be2":   nrm((1, E), 0.02),
            "w_m1":  nrm((E, H), 0.05),
            "b_m1":  nrm((1, H), 0.02),
            "w_m2":  nrm((H, E), 0.05),
            "b_m2":  nrm((1, E), 0.02),
        })
    return params


if __name__ == "__main__":
    # D != EMBED_DIM so dim_adjust is active (as in the torch module).
    # N = B*Hs*Ws = 32 -> 2 grid steps of 16 rows (exercises the multi-step path).
    B, Hs, Ws, D = 2, 4, 4, 24
    key = jax.random.PRNGKey(0)
    kx, kp = jax.random.split(key)
    x = jax.random.normal(kx, (B, Hs, Ws, D), jnp.float32)
    params = init_params(kp, D)

    out = jax.jit(time_aggregator_forward)(x, params)
    out = jax.block_until_ready(out)

    assert out.shape == (B, NUM_LATENTS, Hs, Ws, EMBED_DIM), out.shape
    ref = reference_forward(x, params)
    np.testing.assert_allclose(np.asarray(out), np.asarray(ref), rtol=2e-3, atol=2e-3)
    print("KERNEL_OK")
</pallas_src>

<mosaic_0001>
module attributes {stable_mosaic.version = 11 : i64} {
  func.func @_fused_kernel(%arg0: i32, %arg1: memref<16x24xf32, #tpu.memory_space<vmem>>, %arg2: memref<8x32xf32, #tpu.memory_space<vmem>>, %arg3: memref<16x256xf32, #tpu.memory_space<vmem>>, %arg4: memref<24x32xf32, #tpu.memory_space<vmem>>, %arg5: memref<256x256xf32, #tpu.memory_space<vmem>>, %arg6: memref<32x256xf32, #tpu.memory_space<vmem>>, %arg7: memref<256x256xf32, #tpu.memory_space<vmem>>, %arg8: memref<256x256xf32, #tpu.memory_space<vmem>>, %arg9: memref<32x256xf32, #tpu.memory_space<vmem>>, %arg10: memref<256x256xf32, #tpu.memory_space<vmem>>, %arg11: memref<256x256xf32, #tpu.memory_space<vmem>>, %arg12: memref<16x256xf32, #tpu.memory_space<vmem>>) attributes {dimension_semantics = [#tpu.dimension_semantics<parallel>], iteration_bounds = array<i64: 2>, scalar_prefetch = 0 : i64, scratch_operands = 0 : i64, tpu.core_type = #tpu.core_type<tc>, window_params = [{transform_indices = @transform_0, window_bounds = array<i64: 16, 24>}, {pipeline_mode = #tpu.pipeline_mode<synchronous>, transform_indices = @transform_1, window_bounds = array<i64: 8, 32>}, {pipeline_mode = #tpu.pipeline_mode<synchronous>, transform_indices = @transform_2, window_bounds = array<i64: 16, 256>}, {pipeline_mode = #tpu.pipeline_mode<synchronous>, transform_indices = @transform_3, window_bounds = array<i64: 24, 32>}, {pipeline_mode = #tpu.pipeline_mode<synchronous>, transform_indices = @transform_4, window_bounds = array<i64: 256, 256>}, {pipeline_mode = #tpu.pipeline_mode<synchronous>, transform_indices = @transform_5, window_bounds = array<i64: 32, 256>}, {pipeline_mode = #tpu.pipeline_mode<synchronous>, transform_indices = @transform_6, window_bounds = array<i64: 256, 256>}, {pipeline_mode = #tpu.pipeline_mode<synchronous>, transform_indices = @transform_7, window_bounds = array<i64: 256, 256>}, {pipeline_mode = #tpu.pipeline_mode<synchronous>, transform_indices = @transform_8, window_bounds = array<i64: 32, 256>}, {pipeline_mode = #tpu.pipeline_mode<synchronous>, transform_indices = @transform_9, window_bounds = array<i64: 256, 256>}, {pipeline_mode = #tpu.pipeline_mode<synchronous>, transform_indices = @transform_10, window_bounds = array<i64: 256, 256>}, {transform_indices = @transform_11, window_bounds = array<i64: 16, 256>}]} {
    %c0 = arith.constant 0 : index
    %c0_0 = arith.constant 0 : index
    %0 = vector.load %arg5[%c0, %c0_0] : memref<256x256xf32, #tpu.memory_space<vmem>>, vector<256x256xf32>
    %c0_1 = arith.constant 0 : index
    %c0_2 = arith.constant 0 : index
    %1 = vector.load %arg1[%c0_1, %c0_2] : memref<16x24xf32, #tpu.memory_space<vmem>>, vector<16x24xf32>
    %c0_3 = arith.constant 0 : index
    %c0_4 = arith.constant 0 : index
    %2 = vector.load %arg4[%c0_3, %c0_4] : memref<24x32xf32, #tpu.memory_space<vmem>>, vector<24x32xf32>
    %cst = arith.constant dense<0.000000e+00> : vector<16x32xf32>
    %3 = tpu.matmul %1, %2, %cst {dimension_numbers = #tpu.dot_dimension_numbers<[1], [0], [0], [1], [0, 0, 1, 1], [], []>} : vector<16x24xf32>, vector<24x32xf32>, vector<16x32xf32> -> vector<16x32xf32>
    %c0_5 = arith.constant 0 : index
    %c0_6 = arith.constant 0 : index
    %4 = vector.load %arg2[%c0_5, %c0_6] : memref<8x32xf32, #tpu.memory_space<vmem>>, vector<1x32xf32>
    %5 = vector.broadcast %4 : vector<1x32xf32> to vector<16x32xf32>
    %6 = arith.addf %3, %5 : vector<16x32xf32>
    %c1 = arith.constant 1 : index
    %c0_7 = arith.constant 0 : index
    %7 = vector.load %arg2[%c1, %c0_7] : memref<8x32xf32, #tpu.memory_space<vmem>>, vector<1x32xf32>
    %c2 = arith.constant 2 : index
    %c0_8 = arith.constant 0 : index
    %8 = vector.load %arg2[%c2, %c0_8] : memref<8x32xf32, #tpu.memory_space<vmem>>, vector<1x32xf32>
    %cst_9 = arith.constant dense<0.000000e+00> : vector<16xf32>
    %9 = vector.multi_reduction <add>, %6, %cst_9 [1] : vector<16x32xf32> to vector<16xf32>
    %10 = vector.shape_cast %9 : vector<16xf32> to vector<16x1xf32>
    %cst_10 = arith.constant 3.200000e+01 : f32
    %11 = vector.broadcast %cst_10 : f32 to vector<16x1xf32>
    %12 = arith.divf %10, %11 : vector<16x1xf32>
    %13 = arith.mulf %6, %6 : vector<16x32xf32>
    %cst_11 = arith.constant dense<0.000000e+00> : vector<16xf32>
    %14 = vector.multi_reduction <add>, %13, %cst_11 [1] : vector<16x32xf32> to vector<16xf32>
    %15 = vector.shape_cast %14 : vector<16xf32> to vector<16x1xf32>
    %cst_12 = arith.constant 3.200000e+01 : f32
    %16 = vector.broadcast %cst_12 : f32 to vector<16x1xf32>
    %17 = arith.divf %15, %16 : vector<16x1xf32>
    %18 = vector.broadcast %12 : vector<16x1xf32> to vector<16x32xf32>
    %19 = arith.subf %6, %18 : vector<16x32xf32>
    %20 = arith.mulf %12, %12 : vector<16x1xf32>
    %21 = arith.subf %17, %20 : vector<16x1xf32>
    %cst_13 = arith.constant 9.99999974E-6 : f32
    %22 = vector.broadcast %cst_13 : f32 to vector<16x1xf32>
    %23 = arith.addf %21, %22 : vector<16x1xf32>
    %24 = math.rsqrt %23 : vector<16x1xf32>
    %25 = vector.broadcast %24 : vector<16x1xf32> to vector<16x32xf32>
    %26 = arith.mulf %19, %25 : vector<16x32xf32>
    %27 = vector.broadcast %7 : vector<1x32xf32> to vector<16x32xf32>
    %28 = arith.mulf %26, %27 : vector<16x32xf32>
    %29 = vector.broadcast %8 : vector<1x32xf32> to vector<16x32xf32>
    %30 = arith.addf %28, %29 : vector<16x32xf32>
    %cst_14 = arith.constant 0.000000e+00 : f32
    %31 = vector.broadcast %cst_14 : f32 to vector<16x32xf32>
    %32 = arith.maximumf %30, %31 : vector<16x32xf32>
    %c0_15 = arith.constant 0 : index
    %c0_16 = arith.constant 0 : index
    %33 = vector.load %arg3[%c0_15, %c0_16] : memref<16x256xf32, #tpu.memory_space<vmem>>, vector<1x256xf32>
    %c3 = arith.constant 3 : index
    %c0_17 = arith.constant 0 : index
    %34 = vector.load %arg2[%c3, %c0_17] : memref<8x32xf32, #tpu.memory_space<vmem>>, vector<1x32xf32>
    %c4 = arith.constant 4 : index
    %c0_18 = arith.constant 0 : index
    %35 = vector.load %arg2[%c4, %c0_18] : memref<8x32xf32, #tpu.memory_space<vmem>>, vector<1x32xf32>
    %c1_19 = arith.constant 1 : index
    %c0_20 = arith.constant 0 : index
    %36 = vector.load %arg3[%c1_19, %c0_20] : memref<16x256xf32, #tpu.memory_space<vmem>>, vector<1x256xf32>
    %c2_21 = arith.constant 2 : index
    %c0_22 = arith.constant 0 : index
    %37 = vector.load %arg3[%c2_21, %c0_22] : memref<16x256xf32, #tpu.memory_space<vmem>>, vector<1x256xf32>
    %c3_23 = arith.constant 3 : index
    %c0_24 = arith.constant 0 : index
    %38 = vector.load %arg3[%c3_23, %c0_24] : memref<16x256xf32, #tpu.memory_space<vmem>>, vector<1x256xf32>
    %c4_25 = arith.constant 4 : index
    %c0_26 = arith.constant 0 : index
    %39 = vector.load %arg3[%c4_25, %c0_26] : memref<16x256xf32, #tpu.memory_space<vmem>>, vector<1x256xf32>
    %c5 = arith.constant 5 : index
    %c0_27 = arith.constant 0 : index
    %40 = vector.load %arg3[%c5, %c0_27] : memref<16x256xf32, #tpu.memory_space<vmem>>, vector<1x256xf32>
    %cst_28 = arith.constant dense<0.000000e+00> : vector<16xf32>
    %41 = vector.multi_reduction <add>, %32, %cst_28 [1] : vector<16x32xf32> to vector<16xf32>
    %42 = vector.shape_cast %41 : vector<16xf32> to vector<16x1xf32>
    %cst_29 = arith.constant 3.200000e+01 : f32
    %43 = vector.broadcast %cst_29 : f32 to vector<16x1xf32>
    %44 = arith.divf %42, %43 : vector<16x1xf32>
    %45 = arith.mulf %32, %32 : vector<16x32xf32>
    %cst_30 = arith.constant dense<0.000000e+00> : vector<16xf32>
    %46 = vector.multi_reduction <add>, %45, %cst_30 [1] : vector<16x32xf32> to vector<16xf32>
    %47 = vector.shape_cast %46 : vector<16xf32> to vector<16x1xf32>
    %cst_31 = arith.constant 3.200000e+01 : f32
    %48 = vector.broadcast %cst_31 : f32 to vector<16x1xf32>
    %49 = arith.divf %47, %48 : vector<16x1xf32>
    %50 = vector.broadcast %44 : vector<16x1xf32> to vector<16x32xf32>
    %51 = arith.subf %32, %50 : vector<16x32xf32>
    %52 = arith.mulf %44, %44 : vector<16x1xf32>
    %53 = arith.subf %49, %52 : vector<16x1xf32>
    %cst_32 = arith.constant 9.99999974E-6 : f32
    %54 = vector.broadcast %cst_32 : f32 to vector<16x1xf32>
    %55 = arith.addf %53, %54 : vector<16x1xf32>
    %56 = math.rsqrt %55 : vector<16x1xf32>
    %57 = vector.broadcast %56 : vector<16x1xf32> to vector<16x32xf32>
    %58 = arith.mulf %51, %57 : vector<16x32xf32>
    %59 = vector.broadcast %34 : vector<1x32xf32> to vector<16x32xf32>
    %60 = arith.mulf %58, %59 : vector<16x32xf32>
    %61 = vector.broadcast %35 : vector<1x32xf32> to vector<16x32xf32>
    %62 = arith.addf %60, %61 : vector<16x32xf32>
    %c0_33 = arith.constant 0 : index
    %c0_34 = arith.constant 0 : index
    %63 = vector.load %arg6[%c0_33, %c0_34] : memref<32x256xf32, #tpu.memory_space<vmem>>, vector<32x256xf32>
    %cst_35 = arith.constant dense<0.000000e+00> : vector<16x256xf32>
    %64 = tpu.matmul %62, %63, %cst_35 {dimension_numbers = #tpu.dot_dimension_numbers<[1], [0], [0], [1], [0, 0, 1, 1], [], []>} : vector<16x32xf32>, vector<32x256xf32>, vector<16x256xf32> -> vector<16x256xf32>
    %65 = vector.broadcast %36 : vector<1x256xf32> to vector<16x256xf32>
    %66 = arith.addf %64, %65 : vector<16x256xf32>
    %67 = vector.broadcast %33 : vector<1x256xf32> to vector<16x256xf32>
    %68 = arith.addf %67, %66 : vector<16x256xf32>
    %cst_36 = arith.constant dense<0.000000e+00> : vector<16x256xf32>
    %69 = tpu.matmul %68, %0, %cst_36 {dimension_numbers = #tpu.dot_dimension_numbers<[1], [0], [0], [1], [0, 0, 1, 1], [], []>} : vector<16x256xf32>, vector<256x256xf32>, vector<16x256xf32> -> vector<16x256xf32>
    %70 = arith.mulf %68, %68 : vector<16x256xf32>
    %cst_37 = arith.constant dense<0.000000e+00> : vector<16x256xf32>
    %71 = tpu.matmul %70, %0, %cst_37 {dimension_numbers = #tpu.dot_dimension_numbers<[1], [0], [0], [1], [0, 0, 1, 1], [], []>} : vector<16x256xf32>, vector<256x256xf32>, vector<16x256xf32> -> vector<16x256xf32>
    %72 = arith.subf %68, %69 : vector<16x256xf32>
    %73 = arith.mulf %69, %69 : vector<16x256xf32>
    %74 = arith.subf %71, %73 : vector<16x256xf32>
    %cst_38 = arith.constant 9.99999974E-6 : f32
    %75 = vector.broadcast %cst_38 : f32 to vector<16x256xf32>
    %76 = arith.addf %74, %75 : vector<16x256xf32>
    %77 = math.rsqrt %76 : vector<16x256xf32>
    %78 = arith.mulf %72, %77 : vector<16x256xf32>
    %79 = vector.broadcast %37 : vector<1x256xf32> to vector<16x256xf32>
    %80 = arith.mulf %78, %79 : vector<16x256xf32>
    %81 = vector.broadcast %38 : vector<1x256xf32> to vector<16x256xf32>
    %82 = arith.addf %80, %81 : vector<16x256xf32>
    %c0_39 = arith.constant 0 : index
    %c0_40 = arith.constant 0 : index
    %83 = vector.load %arg7[%c0_39, %c0_40] : memref<256x256xf32, #tpu.memory_space<vmem>>, vector<256x256xf32>
    %cst_41 = arith.constant dense<0.000000e+00> : vector<16x256xf32>
    %84 = tpu.matmul %82, %83, %cst_41 {dimension_numbers = #tpu.dot_dimension_numbers<[1], [0], [0], [1], [0, 0, 1, 1], [], []>} : vector<16x256xf32>, vector<256x256xf32>, vector<16x256xf32> -> vector<16x256xf32>
    %85 = vector.broadcast %39 : vector<1x256xf32> to vector<16x256xf32>
    %86 = arith.addf %84, %85 : vector<16x256xf32>
    %cst_42 = arith.constant 5.000000e-01 : f32
    %87 = vector.broadcast %cst_42 : f32 to vector<16x256xf32>
    %88 = arith.mulf %87, %86 : vector<16x256xf32>
    %cst_43 = arith.constant 0.707106769 : f32
    %89 = vector.broadcast %cst_43 : f32 to vector<16x256xf32>
    %90 = arith.mulf %86, %89 : vector<16x256xf32>
    %91 = math.erf %90 : vector<16x256xf32>
    %cst_44 = arith.constant 1.000000e+00 : f32
    %92 = vector.broadcast %cst_44 : f32 to vector<16x256xf32>
    %93 = arith.addf %92, %91 : vector<16x256xf32>
    %94 = arith.mulf %88, %93 : vector<16x256xf32>
    %c0_45 = arith.constant 0 : index
    %c0_46 = arith.constant 0 : index
    %95 = vector.load %arg8[%c0_45, %c0_46] : memref<256x256xf32, #tpu.memory_space<vmem>>, vector<256x256xf32>
    %cst_47 = arith.constant dense<0.000000e+00> : vector<16x256xf32>
    %96 = tpu.matmul %94, %95, %cst_47 {dimension_numbers = #tpu.dot_dimension_numbers<[1], [0], [0], [1], [0, 0, 1, 1], [], []>} : vector<16x256xf32>, vector<256x256xf32>, vector<16x256xf32> -> vector<16x256xf32>
    %97 = arith.addf %68, %96 : vector<16x256xf32>
    %98 = vector.broadcast %40 : vector<1x256xf32> to vector<16x256xf32>
    %99 = arith.addf %97, %98 : vector<16x256xf32>
    %c5_48 = arith.constant 5 : index
    %c0_49 = arith.constant 0 : index
    %100 = vector.load %arg2[%c5_48, %c0_49] : memref<8x32xf32, #tpu.memory_space<vmem>>, vector<1x32xf32>
    %c6 = arith.constant 6 : index
    %c0_50 = arith.constant 0 : index
    %101 = vector.load %arg2[%c6, %c0_50] : memref<8x32xf32, #tpu.memory_space<vmem>>, vector<1x32xf32>
    %c6_51 = arith.constant 6 : index
    %c0_52 = arith.constant 0 : index
    %102 = vector.load %arg3[%c6_51, %c0_52] : memref<16x256xf32, #tpu.memory_space<vmem>>, vector<1x256xf32>
    %c7 = arith.constant 7 : index
    %c0_53 = arith.constant 0 : index
    %103 = vector.load %arg3[%c7, %c0_53] : memref<16x256xf32, #tpu.memory_space<vmem>>, vector<1x256xf32>
    %c8 = arith.constant 8 : index
    %c0_54 = arith.constant 0 : index
    %104 = vector.load %arg3[%c8, %c0_54] : memref<16x256xf32, #tpu.memory_space<vmem>>, vector<1x256xf32>
    %c9 = arith.constant 9 : index
    %c0_55 = arith.constant 0 : index
    %105 = vector.load %arg3[%c9, %c0_55] : memref<16x256xf32, #tpu.memory_space<vmem>>, vector<1x256xf32>
    %c10 = arith.constant 10 : index
    %c0_56 = arith.constant 0 : index
    %106 = vector.load %arg3[%c10, %c0_56] : memref<16x256xf32, #tpu.memory_space<vmem>>, vector<1x256xf32>
    %cst_57 = arith.constant dense<0.000000e+00> : vector<16xf32>
    %107 = vector.multi_reduction <add>, %32, %cst_57 [1] : vector<16x32xf32> to vector<16xf32>
    %108 = vector.shape_cast %107 : vector<16xf32> to vector<16x1xf32>
    %cst_58 = arith.constant 3.200000e+01 : f32
    %109 = vector.broadcast %cst_58 : f32 to vector<16x1xf32>
    %110 = arith.divf %108, %109 : vector<16x1xf32>
    %111 = arith.mulf %32, %32 : vector<16x32xf32>
    %cst_59 = arith.constant dense<0.000000e+00> : vector<16xf32>
    %112 = vector.multi_reduction <add>, %111, %cst_59 [1] : vector<16x32xf32> to vector<16xf32>
    %113 = vector.shape_cast %112 : vector<16xf32> to vector<16x1xf32>
    %cst_60 = arith.constant 3.200000e+01 : f32
    %114 = vector.broadcast %cst_60 : f32 to vector<16x1xf32>
    %115 = arith.divf %113, %114 : vector<16x1xf32>
    %116 = vector.broadcast %110 : vector<16x1xf32> to vector<16x32xf32>
    %117 = arith.subf %32, %116 : vector<16x32xf32>
    %118 = arith.mulf %110, %110 : vector<16x1xf32>
    %119 = arith.subf %115, %118 : vector<16x1xf32>
    %cst_61 = arith.constant 9.99999974E-6 : f32
    %120 = vector.broadcast %cst_61 : f32 to vector<16x1xf32>
    %121 = arith.addf %119, %120 : vector<16x1xf32>
    %122 = math.rsqrt %121 : vector<16x1xf32>
    %123 = vector.broadcast %122 : vector<16x1xf32> to vector<16x32xf32>
    %124 = arith.mulf %117, %123 : vector<16x32xf32>
    %125 = vector.broadcast %100 : vector<1x32xf32> to vector<16x32xf32>
    %126 = arith.mulf %124, %125 : vector<16x32xf32>
    %127 = vector.broadcast %101 : vector<1x32xf32> to vector<16x32xf32>
    %128 = arith.addf %126, %127 : vector<16x32xf32>
    %c0_62 = arith.constant 0 : index
    %c0_63 = arith.constant 0 : index
    %129 = vector.load %arg9[%c0_62, %c0_63] : memref<32x256xf32, #tpu.memory_space<vmem>>, vector<32x256xf32>
    %cst_64 = arith.constant dense<0.000000e+00> : vector<16x256xf32>
    %130 = tpu.matmul %128, %129, %cst_64 {dimension_numbers = #tpu.dot_dimension_numbers<[1], [0], [0], [1], [0, 0, 1, 1], [], []>} : vector<16x32xf32>, vector<32x256xf32>, vector<16x256xf32> -> vector<16x256xf32>
    %131 = vector.broadcast %102 : vector<1x256xf32> to vector<16x256xf32>
    %132 = arith.addf %130, %131 : vector<16x256xf32>
    %133 = arith.addf %99, %132 : vector<16x256xf32>
    %cst_65 = arith.constant dense<0.000000e+00> : vector<16x256xf32>
    %134 = tpu.matmul %133, %0, %cst_65 {dimension_numbers = #tpu.dot_dimension_numbers<[1], [0], [0], [1], [0, 0, 1, 1], [], []>} : vector<16x256xf32>, vector<256x256xf32>, vector<16x256xf32> -> vector<16x256xf32>
    %135 = arith.mulf %133, %133 : vector<16x256xf32>
    %cst_66 = arith.constant dense<0.000000e+00> : vector<16x256xf32>
    %136 = tpu.matmul %135, %0, %cst_66 {dimension_numbers = #tpu.dot_dimension_numbers<[1], [0], [0], [1], [0, 0, 1, 1], [], []>} : vector<16x256xf32>, vector<256x256xf32>, vector<16x256xf32> -> vector<16x256xf32>
    %137 = arith.subf %133, %134 : vector<16x256xf32>
    %138 = arith.mulf %134, %134 : vector<16x256xf32>
    %139 = arith.subf %136, %138 : vector<16x256xf32>
    %cst_67 = arith.constant 9.99999974E-6 : f32
    %140 = vector.broadcast %cst_67 : f32 to vector<16x256xf32>
    %141 = arith.addf %139, %140 : vector<16x256xf32>
    %142 = math.rsqrt %141 : vector<16x256xf32>
    %143 = arith.mulf %137, %142 : vector<16x256xf32>
    %144 = vector.broadcast %103 : vector<1x256xf32> to vector<16x256xf32>
    %145 = arith.mulf %143, %144 : vector<16x256xf32>
    %146 = vector.broadcast %104 : vector<1x256xf32> to vector<16x256xf32>
    %147 = arith.addf %145, %146 : vector<16x256xf32>
    %c0_68 = arith.constant 0 : index
    %c0_69 = arith.constant 0 : index
    %148 = vector.load %arg10[%c0_68, %c0_69] : memref<256x256xf32, #tpu.memory_space<vmem>>, vector<256x256xf32>
    %cst_70 = arith.constant dense<0.000000e+00> : vector<16x256xf32>
    %149 = tpu.matmul %147, %148, %cst_70 {dimension_numbers = #tpu.dot_dimension_numbers<[1], [0], [0], [1], [0, 0, 1, 1], [], []>} : vector<16x256xf32>, vector<256x256xf32>, vector<16x256xf32> -> vector<16x256xf32>
    %150 = vector.broadcast %105 : vector<1x256xf32> to vector<16x256xf32>
    %151 = arith.addf %149, %150 : vector<16x256xf32>
    %cst_71 = arith.constant 5.000000e-01 : f32
    %152 = vector.broadcast %cst_71 : f32 to vector<16x256xf32>
    %153 = arith.mulf %152, %151 : vector<16x256xf32>
    %cst_72 = arith.constant 0.707106769 : f32
    %154 = vector.broadcast %cst_72 : f32 to vector<16x256xf32>
    %155 = arith.mulf %151, %154 : vector<16x256xf32>
    %156 = math.erf %155 : vector<16x256xf32>
    %cst_73 = arith.constant 1.000000e+00 : f32
    %157 = vector.broadcast %cst_73 : f32 to vector<16x256xf32>
    %158 = arith.addf %157, %156 : vector<16x256xf32>
    %159 = arith.mulf %153, %158 : vector<16x256xf32>
    %c0_74 = arith.constant 0 : index
    %c0_75 = arith.constant 0 : index
    %160 = vector.load %arg11[%c0_74, %c0_75] : memref<256x256xf32, #tpu.memory_space<vmem>>, vector<256x256xf32>
    %cst_76 = arith.constant dense<0.000000e+00> : vector<16x256xf32>
    %161 = tpu.matmul %159, %160, %cst_76 {dimension_numbers = #tpu.dot_dimension_numbers<[1], [0], [0], [1], [0, 0, 1, 1], [], []>} : vector<16x256xf32>, vector<256x256xf32>, vector<16x256xf32> -> vector<16x256xf32>
    %162 = arith.addf %133, %161 : vector<16x256xf32>
    %163 = vector.broadcast %106 : vector<1x256xf32> to vector<16x256xf32>
    %164 = arith.addf %162, %163 : vector<16x256xf32>
    %c0_77 = arith.constant 0 : index
    %c0_78 = arith.constant 0 : index
    %165 = vector.load %arg12[%c0_77, %c0_78] : memref<16x256xf32, #tpu.memory_space<vmem>>, vector<16x256xf32>
    tpu.vector_store %arg12[%c0_77, %c0_78], %164 {strides = array<i32>} : memref<16x256xf32, #tpu.memory_space<vmem>>, vector<16x256xf32>,
    return
  }
  func.func @transform_0(%arg0: i32) -> (i32, i32) {
    %c0_i32 = arith.constant 0 : i32
    %c0_i32_0 = arith.constant 0 : i32
    return %arg0, %c0_i32 : i32, i32
  }
  func.func @transform_1(%arg0: i32) -> (i32, i32) {
    %c0_i32 = arith.constant 0 : i32
    %c0_i32_0 = arith.constant 0 : i32
    %c0_i32_1 = arith.constant 0 : i32
    return %c0_i32, %c0_i32_0 : i32, i32
  }
  func.func @transform_2(%arg0: i32) -> (i32, i32) {
    %c0_i32 = arith.constant 0 : i32
    %c0_i32_0 = arith.constant 0 : i32
    %c0_i32_1 = arith.constant 0 : i32
    return %c0_i32, %c0_i32_0 : i32, i32
  }
  func.func @transform_3(%arg0: i32) -> (i32, i32) {
    %c0_i32 = arith.constant 0 : i32
    %c0_i32_0 = arith.constant 0 : i32
    %c0_i32_1 = arith.constant 0 : i32
    return %c0_i32, %c0_i32_0 : i32, i32
  }
  func.func @transform_4(%arg0: i32) -> (i32, i32) {
    %c0_i32 = arith.constant 0 : i32
    %c0_i32_0 = arith.constant 0 : i32
    %c0_i32_1 = arith.constant 0 : i32
    return %c0_i32, %c0_i32_0 : i32, i32
  }
  func.func @transform_5(%arg0: i32) -> (i32, i32) {
    %c0_i32 = arith.constant 0 : i32
    %c0_i32_0 = arith.constant 0 : i32
    %c0_i32_1 = arith.constant 0 : i32
    return %c0_i32, %c0_i32_0 : i32, i32
  }
  func.func @transform_6(%arg0: i32) -> (i32, i32) {
    %c0_i32 = arith.constant 0 : i32
    %c0_i32_0 = arith.constant 0 : i32
    %c0_i32_1 = arith.constant 0 : i32
    return %c0_i32, %c0_i32_0 : i32, i32
  }
  func.func @transform_7(%arg0: i32) -> (i32, i32) {
    %c0_i32 = arith.constant 0 : i32
    %c0_i32_0 = arith.constant 0 : i32
    %c0_i32_1 = arith.constant 0 : i32
    return %c0_i32, %c0_i32_0 : i32, i32
  }
  func.func @transform_8(%arg0: i32) -> (i32, i32) {
    %c0_i32 = arith.constant 0 : i32
    %c0_i32_0 = arith.constant 0 : i32
    %c0_i32_1 = arith.constant 0 : i32
    return %c0_i32, %c0_i32_0 : i32, i32
  }
  func.func @transform_9(%arg0: i32) -> (i32, i32) {
    %c0_i32 = arith.constant 0 : i32
    %c0_i32_0 = arith.constant 0 : i32
    %c0_i32_1 = arith.constant 0 : i32
    return %c0_i32, %c0_i32_0 : i32, i32
  }
  func.func @transform_10(%arg0: i32) -> (i32, i32) {
    %c0_i32 = arith.constant 0 : i32
    %c0_i32_0 = arith.constant 0 : i32
    %c0_i32_1 = arith.constant 0 : i32
    return %c0_i32, %c0_i32_0 : i32, i32
  }
  func.func @transform_11(%arg0: i32) -> (i32, i32) {
    %c0_i32 = arith.constant 0 : i32
    %c0_i32_0 = arith.constant 0 : i32
    return %arg0, %c0_i32 : i32, i32
  }
}

</mosaic_0001>

<llo_original>
// kernel: tile.119
$region0: #{tile.119}
  %s0 = inlined_call_operand.vmem [shape: f32[32,8,32], index: 0, kind: input, shape index: {}]
  %s1 = inlined_call_operand.vmem [shape: f32[32,256], index: 1, kind: output, shape index: {}]
  %v2 = vld [vmem:[%s0] ss:$4 sm:$0xff]
  %vm3 = vcmask 261120
  %4 = vst.msk [vmem:[%s1] ss:$8 sm:$0x3] %vm3, %v2
  %s5 = scalar_lea.vmem %s1, 4294967281
  %6 = vst.msk [vmem:[%s5] ss:$8 sm:$0xc] %vm3, %v2
  %s7 = scalar_lea.vmem %s1, 4294967266
  %8 = vst.msk [vmem:[%s7] ss:$8 sm:$0x30] %vm3, %v2
  %s9 = scalar_lea.vmem %s1, 4294967251
  %10 = vst.msk [vmem:[%s9] ss:$8 sm:$0xc0] %vm3, %v2
  %s11 = scalar_lea.vmem %s0, 32
  %v12 = vld [vmem:[%s11] ss:$4 sm:$0xff]
  %vm13 = vcmask 261120
  %s14 = scalar_lea.vmem %s1, 4
  %15 = vst.msk [vmem:[%s14] ss:$8 sm:$0x3] %vm13, %v12
  %s16 = scalar_lea.vmem %s1, 4294967285
  %17 = vst.msk [vmem:[%s16] ss:$8 sm:$0xc] %vm13, %v12
  %s18 = scalar_lea.vmem %s1, 4294967270
  %19 = vst.msk [vmem:[%s18] ss:$8 sm:$0x30] %vm13, %v12
  %s20 = scalar_lea.vmem %s1, 4294967255
  %21 = vst.msk [vmem:[%s20] ss:$8 sm:$0xc0] %vm13, %v12
  %s22 = scalar_lea.vmem %s0, 64
  %v23 = vld [vmem:[%s22] ss:$4 sm:$0xff]
  %vm24 = vcmask 261120
  %s25 = scalar_lea.vmem %s1, 16
  %26 = vst.msk [vmem:[%s25] ss:$8 sm:$0x3] %vm24, %v23
  %s27 = scalar_lea.vmem %s1, 1
  %28 = vst.msk [vmem:[%s27] ss:$8 sm:$0xc] %vm24, %v23
  %s29 = scalar_lea.vmem %s1, 4294967282
  %30 = vst.msk [vmem:[%s29] ss:$8 sm:$0x30] %vm24, %v23
  %s31 = scalar_lea.vmem %s1, 4294967267
  %32 = vst.msk [vmem:[%s31] ss:$8 sm:$0xc0] %vm24, %v23
  %s33 = scalar_lea.vmem %s0, 96
  %v34 = vld [vmem:[%s33] ss:$4 sm:$0xff]
  %vm35 = vcmask 261120
  %s36 = scalar_lea.vmem %s1, 20
  %37 = vst.msk [vmem:[%s36] ss:$8 sm:$0x3] %vm35, %v34
  %s38 = scalar_lea.vmem %s1, 5
  %39 = vst.msk [vmem:[%s38] ss:$8 sm:$0xc] %vm35, %v34
  %s40 = scalar_lea.vmem %s1, 4294967286
  %41 = vst.msk [vmem:[%s40] ss:$8 sm:$0x30] %vm35, %v34
  %s42 = scalar_lea.vmem %s1, 4294967271
  %43 = vst.msk [vmem:[%s42] ss:$8 sm:$0xc0] %vm35, %v34
  %s44 = scalar_lea.vmem %s0, 128
  %v45 = vld [vmem:[%s44] ss:$4 sm:$0xff]
  %vm46 = vcmask 261120
  %s47 = scalar_lea.vmem %s1, 32
  %48 = vst.msk [vmem:[%s47] ss:$8 sm:$0x3] %vm46, %v45
  %s49 = scalar_lea.vmem %s1, 17
  %50 = vst.msk [vmem:[%s49] ss:$8 sm:$0xc] %vm46, %v45
  %s51 = scalar_lea.vmem %s1, 2
  %52 = vst.msk [vmem:[%s51] ss:$8 sm:$0x30] %vm46, %v45
  %s53 = scalar_lea.vmem %s1, 4294967283
  %54 = vst.msk [vmem:[%s53] ss:$8 sm:$0xc0] %vm46, %v45
  %s55 = scalar_lea.vmem %s0, 160
  %v56 = vld [vmem:[%s55] ss:$4 sm:$0xff]
  %vm57 = vcmask 261120
  %s58 = scalar_lea.vmem %s1, 36
  %59 = vst.msk [vmem:[%s58] ss:$8 sm:$0x3] %vm57, %v56
  %s60 = scalar_lea.vmem %s1, 21
  %61 = vst.msk [vmem:[%s60] ss:$8 sm:$0xc] %vm57, %v56
  %s62 = scalar_lea.vmem %s1, 6
  %63 = vst.msk [vmem:[%s62] ss:$8 sm:$0x30] %vm57, %v56
  %s64 = scalar_lea.vmem %s1, 4294967287
  %65 = vst.msk [vmem:[%s64] ss:$8 sm:$0xc0] %vm57, %v56
  %s66 = scalar_lea.vmem %s0, 192
  %v67 = vld [vmem:[%s66] ss:$4 sm:$0xff]
  %vm68 = vcmask 261120
  %s69 = scalar_lea.vmem %s1, 48
  %70 = vst.msk [vmem:[%s69] ss:$8 sm:$0x3] %vm68, %v67
  %s71 = scalar_lea.vmem %s1, 33
  %72 = vst.msk [vmem:[%s71] ss:$8 sm:$0xc] %vm68, %v67
  %s73 = scalar_lea.vmem %s1, 18
  %74 = vst.msk [vmem:[%s73] ss:$8 sm:$0x30] %vm68, %v67
  %s75 = scalar_lea.vmem %s1, 3
  %76 = vst.msk [vmem:[%s75] ss:$8 sm:$0xc0] %vm68, %v67
  %s77 = scalar_lea.vmem %s0, 224
  %v78 = vld [vmem:[%s77] ss:$4 sm:$0xff]
  %vm79 = vcmask 261120
  %s80 = scalar_lea.vmem %s1, 52
  %81 = vst.msk [vmem:[%s80] ss:$8 sm:$0x3] %vm79, %v78
  %s82 = scalar_lea.vmem %s1, 37
  %83 = vst.msk [vmem:[%s82] ss:$8 sm:$0xc] %vm79, %v78
  %s84 = scalar_lea.vmem %s1, 22
  %85 = vst.msk [vmem:[%s84] ss:$8 sm:$0x30] %vm79, %v78
  %s86 = scalar_lea.vmem %s1, 7
  %87 = vst.msk [vmem:[%s86] ss:$8 sm:$0xc0] %vm79, %v78
  %s88 = scalar_lea.vmem %s0, 3
  %v89 = vld [vmem:[%s88] ss:$8 sm:$0xf]
  %s90 = scalar_lea.vmem %s0, 3
  %v91 = vld [vmem:[%s90] ss:$8 sm:$0xf0]
  %vm92 = vcmask 1047556
  %v93 = vsel %vm92, %v91, %v89
  %94 = vrot.lane.b32.xlu0 %v93, 96
  %v95 = vpop.permute.xlu0 %94
  %vm96 = vcmask 1048320
  %97 = vst.msk [vmem:[%s1] sm:$0xff] %vm96, %v95
  %s98 = scalar_lea.vmem %s0, 131
  %v99 = vld [vmem:[%s98] ss:$8 sm:$0xf]
  %s100 = scalar_lea.vmem %s0, 131
  %v101 = vld [vmem:[%s100] ss:$8 sm:$0xf0]
  %vm102 = vcmask 1047556
  %v103 = vsel %vm102, %v101, %v99
  %104 = vrot.lane.b32.xlu0 %v103, 96
  %v105 = vpop.permute.xlu0 %104
  %vm106 = vcmask 1048320
  %s107 = scalar_lea.vmem %s1, 32
  %108 = vst.msk [vmem:[%s107] sm:$0xff] %vm106, %v105
  %s109 = scalar_lea.vmem %s0, 7
  %v110 = vld [vmem:[%s109] ss:$8 sm:$0xf]
  %s111 = scalar_lea.vmem %s0, 7
  %v112 = vld [vmem:[%s111] ss:$8 sm:$0xf0]
  %vm113 = vcmask 1047556
  %v114 = vsel %vm113, %v112, %v110
  %115 = vrot.lane.b32.xlu0 %v114, 96
  %v116 = vpop.permute.xlu0 %115
  %vm117 = vcmask 1048320
  %s118 = scalar_lea.vmem %s1, 8
  %119 = vst.msk [vmem:[%s118] sm:$0xff] %vm117, %v116
  %s120 = scalar_lea.vmem %s0, 135
  %v121 = vld [vmem:[%s120] ss:$8 sm:$0xf]
  %s122 = scalar_lea.vmem %s0, 135
  %v123 = vld [vmem:[%s122] ss:$8 sm:$0xf0]
  %vm124 = vcmask 1047556
  %v125 = vsel %vm124, %v123, %v121
  %126 = vrot.lane.b32.xlu0 %v125, 96
  %v127 = vpop.permute.xlu0 %126
  %vm128 = vcmask 1048320
  %s129 = scalar_lea.vmem %s1, 40
  %130 = vst.msk [vmem:[%s129] sm:$0xff] %vm128, %v127
  %s131 = scalar_lea.vmem %s0, 67
  %v132 = vld [vmem:[%s131] ss:$8 sm:$0xf]
  %s133 = scalar_lea.vmem %s0, 67
  %v134 = vld [vmem:[%s133] ss:$8 sm:$0xf0]
  %vm135 = vcmask 1047556
  %v136 = vsel %vm135, %v134, %v132
  %137 = vrot.lane.b32.xlu0 %v136, 96
  %v138 = vpop.permute.xlu0 %137
  %vm139 = vcmask 1048320
  %s140 = scalar_lea.vmem %s1, 16
  %141 = vst.msk [vmem:[%s140] sm:$0xff] %vm139, %v138
  %s142 = scalar_lea.vmem %s0, 195
  %v143 = vld [vmem:[%s142] ss:$8 sm:$0xf]
  %s144 = scalar_lea.vmem %s0, 195
  %v145 = vld [vmem:[%s144] ss:$8 sm:$0xf0]
  %vm146 = vcmask 1047556
  %v147 = vsel %vm146, %v145, %v143
  %148 = vrot.lane.b32.xlu0 %v147, 96
  %v149 = vpop.permute.xlu0 %148
  %vm150 = vcmask 1048320
  %s151 = scalar_lea.vmem %s1, 48
  %152 = vst.msk [vmem:[%s151] sm:$0xff] %vm150, %v149
  %s153 = scalar_lea.vmem %s0, 71
  %v154 = vld [vmem:[%s153] ss:$8 sm:$0xf]
  %s155 = scalar_lea.vmem %s0, 71
  %v156 = vld [vmem:[%s155] ss:$8 sm:$0xf0]
  %vm157 = vcmask 1047556
  %v158 = vsel %vm157, %v156, %v154
  %159 = vrot.lane.b32.xlu0 %v158, 96
  %v160 = vpop.permute.xlu0 %159
  %vm161 = vcmask 1048320
  %s162 = scalar_lea.vmem %s1, 24
  %163 = vst.msk [vmem:[%s162] sm:$0xff] %vm161, %v160
  %s164 = scalar_lea.vmem %s0, 199
  %v165 = vld [vmem:[%s164] ss:$8 sm:$0xf]
  %s166 = scalar_lea.vmem %s0, 199
  %v167 = vld [vmem:[%s166] ss:$8 sm:$0xf0]
  %vm168 = vcmask 1047556
  %v169 = vsel %vm168, %v167, %v165
  %170 = vrot.lane.b32.xlu0 %v169, 96
  %v171 = vpop.permute.xlu0 %170
  %vm172 = vcmask 1048320
  %s173 = scalar_lea.vmem %s1, 56
  %174 = vst.msk [vmem:[%s173] sm:$0xff] %vm172, %v171
  %s175 = scalar_lea.vmem %s0, 2
  %v176 = vld [vmem:[%s175] ss:$8 sm:$0xf]
  %s177 = scalar_lea.vmem %s0, 2
  %v178 = vld [vmem:[%s177] ss:$8 sm:$0xf0]
  %vm179 = vcmask 1047556
  %v180 = vsel %vm179, %v178, %v176
  %181 = vrot.lane.b32.xlu0 %v180, 64
  %v182 = vpop.permute.xlu0 %181
  %vm183 = vcmask 785920
  %184 = vst.msk [vmem:[%s1] sm:$0xff] %vm183, %v182
  %s185 = scalar_lea.vmem %s0, 130
  %v186 = vld [vmem:[%s185] ss:$8 sm:$0xf]
  %s187 = scalar_lea.vmem %s0, 130
  %v188 = vld [vmem:[%s187] ss:$8 sm:$0xf0]
  %vm189 = vcmask 1047556
  %v190 = vsel %vm189, %v188, %v186
  %191 = vrot.lane.b32.xlu0 %v190, 64
  %v192 = vpop.permute.xlu0 %191
  %vm193 = vcmask 785920
  %s194 = scalar_lea.vmem %s1, 32
  %195 = vst.msk [vmem:[%s194] sm:$0xff] %vm193, %v192
  %s196 = scalar_lea.vmem %s0, 6
  %v197 = vld [vmem:[%s196] ss:$8 sm:$0xf]
  %s198 = scalar_lea.vmem %s0, 6
  %v199 = vld [vmem:[%s198] ss:$8 sm:$0xf0]
  %vm200 = vcmask 1047556
  %v201 = vsel %vm200, %v199, %v197
  %202 = vrot.lane.b32.xlu0 %v201, 64
  %v203 = vpop.permute.xlu0 %202
  %vm204 = vcmask 785920
  %s205 = scalar_lea.vmem %s1, 8
  %206 = vst.msk [vmem:[%s205] sm:$0xff] %vm204, %v203
  %s207 = scalar_lea.vmem %s0, 134
  %v208 = vld [vmem:[%s207] ss:$8 sm:$0xf]
  %s209 = scalar_lea.vmem %s0, 134
  %v210 = vld [vmem:[%s209] ss:$8 sm:$0xf0]
  %vm211 = vcmask 1047556
  %v212 = vsel %vm211, %v210, %v208
  %213 = vrot.lane.b32.xlu0 %v212, 64
  %v214 = vpop.permute.xlu0 %213
  %vm215 = vcmask 785920
  %s216 = scalar_lea.vmem %s1, 40
  %217 = vst.msk [vmem:[%s216] sm:$0xff] %vm215, %v214
  %s218 = scalar_lea.vmem %s0, 66
  %v219 = vld [vmem:[%s218] ss:$8 sm:$0xf]
  %s220 = scalar_lea.vmem %s0, 66
  %v221 = vld [vmem:[%s220] ss:$8 sm:$0xf0]
  %vm222 = vcmask 1047556
  %v223 = vsel %vm222, %v221, %v219
  %224 = vrot.lane.b32.xlu0 %v223, 64
  %v225 = vpop.permute.xlu0 %224
  %vm226 = vcmask 785920
  %s227 = scalar_lea.vmem %s1, 16
  %228 = vst.msk [vmem:[%s227] sm:$0xff] %vm226, %v225
  %s229 = scalar_lea.vmem %s0, 194
  %v230 = vld [vmem:[%s229] ss:$8 sm:$0xf]
  %s231 = scalar_lea.vmem %s0, 194
  %v232 = vld [vmem:[%s231] ss:$8 sm:$0xf0]
  %vm233 = vcmask 1047556
  %v234 = vsel %vm233, %v232, %v230
  %235 = vrot.lane.b32.xlu0 %v234, 64
  %v236 = vpop.permute.xlu0 %235
  %vm237 = vcmask 785920
  %s238 = scalar_lea.vmem %s1, 48
  %239 = vst.msk [vmem:[%s238] sm:$0xff] %vm237, %v236
  %s240 = scalar_lea.vmem %s0, 70
  %v241 = vld [vmem:[%s240] ss:$8 sm:$0xf]
  %s242 = scalar_lea.vmem %s0, 70
  %v243 = vld [vmem:[%s242] ss:$8 sm:$0xf0]
  %vm244 = vcmask 1047556
  %v245 = vsel %vm244, %v243, %v241
  %246 = vrot.lane.b32.xlu0 %v245, 64
  %v247 = vpop.permute.xlu0 %246
  %vm248 = vcmask 785920
  %s249 = scalar_lea.vmem %s1, 24
  %250 = vst.msk [vmem:[%s249] sm:$0xff] %vm248, %v247
  %s251 = scalar_lea.vmem %s0, 198
  %v252 = vld [vmem:[%s251] ss:$8 sm:$0xf]
  %s253 = scalar_lea.vmem %s0, 198
  %v254 = vld [vmem:[%s253] ss:$8 sm:$0xf0]
  %vm255 = vcmask 1047556
  %v256 = vsel %vm255, %v254, %v252
  %257 = vrot.lane.b32.xlu0 %v256, 64
  %v258 = vpop.permute.xlu0 %257
  %vm259 = vcmask 785920
  %s260 = scalar_lea.vmem %s1, 56
  %261 = vst.msk [vmem:[%s260] sm:$0xff] %vm259, %v258
  %s262 = scalar_lea.vmem %s0, 1
  %v263 = vld [vmem:[%s262] ss:$8 sm:$0xf]
  %s264 = scalar_lea.vmem %s0, 1
  %v265 = vld [vmem:[%s264] ss:$8 sm:$0xf0]
  %vm266 = vcmask 1047556
  %v267 = vsel %vm266, %v265, %v263
  %268 = vrot.lane.b32.xlu0 %v267, 32
  %v269 = vpop.permute.xlu0 %268
  %vm270 = vcmask 523520
  %271 = vst.msk [vmem:[%s1] sm:$0xff] %vm270, %v269
  %s272 = scalar_lea.vmem %s0, 129
  %v273 = vld [vmem:[%s272] ss:$8 sm:$0xf]
  %s274 = scalar_lea.vmem %s0, 129
  %v275 = vld [vmem:[%s274] ss:$8 sm:$0xf0]
  %vm276 = vcmask 1047556
  %v277 = vsel %vm276, %v275, %v273
  %278 = vrot.lane.b32.xlu0 %v277, 32
  %v279 = vpop.permute.xlu0 %278
  %vm280 = vcmask 523520
  %s281 = scalar_lea.vmem %s1, 32
  %282 = vst.msk [vmem:[%s281] sm:$0xff] %vm280, %v279
  %s283 = scalar_lea.vmem %s0, 5
  %v284 = vld [vmem:[%s283] ss:$8 sm:$0xf]
  %s285 = scalar_lea.vmem %s0, 5
  %v286 = vld [vmem:[%s285] ss:$8 sm:$0xf0]
  %vm287 = vcmask 1047556
  %v288 = vsel %vm287, %v286, %v284
  %289 = vrot.lane.b32.xlu0 %v288, 32
  %v290 = vpop.permute.xlu0 %289
  %vm291 = vcmask 523520
  %s292 = scalar_lea.vmem %s1, 8
  %293 = vst.msk [vmem:[%s292] sm:$0xff] %vm291, %v290
  %s294 = scalar_lea.vmem %s0, 133
  %v295 = vld [vmem:[%s294] ss:$8 sm:$0xf]
  %s296 = scalar_lea.vmem %s0, 133
  %v297 = vld [vmem:[%s296] ss:$8 sm:$0xf0]
  %vm298 = vcmask 1047556
  %v299 = vsel %vm298, %v297, %v295
  %300 = vrot.lane.b32.xlu0 %v299, 32
  %v301 = vpop.permute.xlu0 %300
  %vm302 = vcmask 523520
  %s303 = scalar_lea.vmem %s1, 40
  %304 = vst.msk [vmem:[%s303] sm:$0xff] %vm302, %v301
  %s305 = scalar_lea.vmem %s0, 65
  %v306 = vld [vmem:[%s305] ss:$8 sm:$0xf]
  %s307 = scalar_lea.vmem %s0, 65
  %v308 = vld [vmem:[%s307] ss:$8 sm:$0xf0]
  %vm309 = vcmask 1047556
  %v310 = vsel %vm309, %v308, %v306
  %311 = vrot.lane.b32.xlu0 %v310, 32
  %v312 = vpop.permute.xlu0 %311
  %vm313 = vcmask 523520
  %s314 = scalar_lea.vmem %s1, 16
  %315 = vst.msk [vmem:[%s314] sm:$0xff] %vm313, %v312
  %s316 = scalar_lea.vmem %s0, 193
  %v317 = vld [vmem:[%s316] ss:$8 sm:$0xf]
  %s318 = scalar_lea.vmem %s0, 193
  %v319 = vld [vmem:[%s318] ss:$8 sm:$0xf0]
  %vm320 = vcmask 1047556
  %v321 = vsel %vm320, %v319, %v317
  %322 = vrot.lane.b32.xlu0 %v321, 32
  %v323 = vpop.permute.xlu0 %322
  %vm324 = vcmask 523520
  %s325 = scalar_lea.vmem %s1, 48
  %326 = vst.msk [vmem:[%s325] sm:$0xff] %vm324, %v323
  %s327 = scalar_lea.vmem %s0, 69
  %v328 = vld [vmem:[%s327] ss:$8 sm:$0xf]
  %s329 = scalar_lea.vmem %s0, 69
  %v330 = vld [vmem:[%s329] ss:$8 sm:$0xf0]
  %vm331 = vcmask 1047556
  %v332 = vsel %vm331, %v330, %v328
  %333 = vrot.lane.b32.xlu0 %v332, 32
  %v334 = vpop.permute.xlu0 %333
  %vm335 = vcmask 523520
  %s336 = scalar_lea.vmem %s1, 24
  %337 = vst.msk [vmem:[%s336] sm:$0xff] %vm335, %v334
  %s338 = scalar_lea.vmem %s0, 197
  %v339 = vld [vmem:[%s338] ss:$8 sm:$0xf]
  %s340 = scalar_lea.vmem %s0, 197
  %v341 = vld [vmem:[%s340] ss:$8 sm:$0xf0]
  %vm342 = vcmask 1047556
  %v343 = vsel %vm342, %v341, %v339
  %344 = vrot.lane.b32.xlu0 %v343, 32
  %v345 = vpop.permute.xlu0 %344
  %vm346 = vcmask 523520
  %s347 = scalar_lea.vmem %s1, 56
  %348 = vst.msk [vmem:[%s347] sm:$0xff] %vm346, %v345

// kernel: time_aggregator_forward.1
$region0: #{time_aggregator_forward.1}
  #allocation0 [shape = 'u32[]', space=smem, size = 0x4, offset = 0x4, fixed_abs, tag = 'smem constant byte address 0x4 - core index']
  #allocation1 [shape = 'u32[144,128]{1,0:T(1,128)}', space=vmem, size = 0x12000, scoped, tag = 'internal scratch']
  %s0 = inlined_call_operand.vmem [shape: f32[32,24], index: 0, kind: input, shape index: {}]
  %s1 = inlined_call_operand.vmem [shape: f32[8,32], index: 1, kind: input, shape index: {}]
  %s2 = inlined_call_operand.vmem [shape: f32[16,256], index: 2, kind: input, shape index: {}]
  %s3 = inlined_call_operand.vmem [shape: f32[24,32], index: 3, kind: input, shape index: {}]
  %s4 = inlined_call_operand.vmem [shape: f32[256,256], index: 4, kind: input, shape index: {}]
  %s5 = inlined_call_operand.vmem [shape: f32[32,256], index: 5, kind: input, shape index: {}]
  %s6 = inlined_call_operand.vmem [shape: f32[256,256], index: 6, kind: input, shape index: {}]
  %s7 = inlined_call_operand.vmem [shape: f32[256,256], index: 7, kind: input, shape index: {}]
  %s8 = inlined_call_operand.vmem [shape: f32[32,256], index: 8, kind: input, shape index: {}]
  %s9 = inlined_call_operand.vmem [shape: f32[256,256], index: 9, kind: input, shape index: {}]
  %s10 = inlined_call_operand.vmem [shape: f32[256,256], index: 10, kind: input, shape index: {}]
  %s11 = inlined_call_operand.vmem [shape: f32[32,256], index: 11, kind: output, shape index: {}]
  %s12 = sld [smem:[#allocation0]]
  $region77: #{time_aggregator_forward.1} parent=0
    _
  %s14 = ssub.s32 1, %s12
  %s15 = scalar_select 0, %s14, %s12
  loop: start=0, step=1, limit=4
  $region2: #{time_aggregator_forward.1} parent=0 // loop_pre_header
    _
  $region3: #{time_aggregator_forward.1} parent=0 // loop_header
    %s17 = sphi 0, %s21
    %p18 = scmp.ge.s32.totalorder %s17, 4
    %s27 = sphi 0, %s29
    %s30 = sphi 0, %s27
    %s31 = sphi 0, %s30
    %s47 = sphi 0, %s31
    %s51 = sphi 0, %s51
    %s53 = sphi 0, %s51
    %s54 = sphi 0, %s53
    %s68 = sphi 0, %s54
    %s72 = sphi 0, %s72
    %s74 = sphi 0, %s72
    %s75 = sphi 0, %s74
    %s89 = sphi 0, %s75
    %s93 = sphi 0, %s93
    %s95 = sphi 0, %s93
    %s96 = sphi 0, %s95
    %s110 = sphi 0, %s96
    %s114 = sphi 0, %s114
    %s116 = sphi 0, %s114
    %s117 = sphi 0, %s116
    %s131 = sphi 0, %s117
    %s135 = sphi 0, %s135
    %s137 = sphi 0, %s135
    %s138 = sphi 0, %s137
    %s152 = sphi 0, %s138
    %s156 = sphi 0, %s156
    %s158 = sphi 0, %s156
    %s159 = sphi 0, %s158
    %s173 = sphi 0, %s159
    %s177 = sphi 0, %s177
    %s179 = sphi 0, %s177
    %s180 = sphi 0, %s179
    %s194 = sphi 0, %s180
    %s198 = sphi 0, %s198
    %s200 = sphi 0, %s198
    %s201 = sphi 0, %s200
    %s215 = sphi 0, %s201
    %s219 = sphi 0, %s219
    %s221 = sphi 0, %s219
    %s222 = sphi 0, %s221
    %s236 = sphi 0, %s222
    %s240 = sphi 0, %s240
    %s242 = sphi 0, %s240
    %s243 = sphi 0, %s242
    %s257 = sphi 0, %s243
    %s263 = sphi 0, %s265
    %s266 = sphi 0, %s263
    %s267 = sphi 0, %s266
    %s283 = sphi 0, %s267
  $region4: #{time_aggregator_forward.1} parent=0 // loop_header_branch
    %20 = sbr.rel (%p18) target = $region8
  $region5: #{time_aggregator_forward.1} parent=0 // loop_body
    %s22 = ssub.s32 %s17, 1
    %s23 = ssub.s32 %s17, 2
    %s24 = sadd.s32 %s17, 1
    %s25 = ssub.s32 %s17, %s24
    %p26 = scmp.eq.s32.totalorder %s25, 0
    %s28 = sadd.s32 %s27, 1
    %s29 = scalar_select %p26, %s27, %s28
    %p32 = pneg %p26
    %p33 = scmp.eq.s32.totalorder %s17, 1
    %p34 = por %p32, %p33
    %p35 = scmp.ne.s32.totalorder %s27, %s30
    %p36 = scmp.eq.s32.totalorder %s17, 0
    %p37 = por %p35, %p36
    %p38 = scmp.ne.s32.totalorder %s27, %s30
    %p39 = scmp.eq.s32.totalorder %s22, 1
    %p40 = por %p38, %p39
    %p41 = scmp.ne.s32.totalorder %s30, %s31
    %p42 = scmp.eq.s32.totalorder %s22, 0
    %p43 = por %p41, %p42
    %p44 = scmp.ne.s32.totalorder %s30, %s31
    %p45 = scmp.eq.s32.totalorder %s23, 1
    %p46 = por %p44, %p45
    %p48 = scmp.ne.s32.totalorder %s31, %s47
    %p49 = scmp.eq.s32.totalorder %s23, 0
    %p50 = por %p48, %p49
    %s52 = sadd.s32 %s51, 1
    %p55 = scmp.eq.s32.totalorder %s17, 1
    %p56 = scmp.ne.s32.totalorder %s51, %s53
    %p57 = scmp.eq.s32.totalorder %s17, 0
    %p58 = por %p56, %p57
    %p59 = scmp.ne.s32.totalorder %s51, %s53
    %p60 = scmp.eq.s32.totalorder %s22, 1
    %p61 = por %p59, %p60
    %p62 = scmp.ne.s32.totalorder %s53, %s54
    %p63 = scmp.eq.s32.totalorder %s22, 0
    %p64 = por %p62, %p63
    %p65 = scmp.ne.s32.totalorder %s53, %s54
    %p66 = scmp.eq.s32.totalorder %s23, 1
    %p67 = por %p65, %p66
    %p69 = scmp.ne.s32.totalorder %s54, %s68
    %p70 = scmp.eq.s32.totalorder %s23, 0
    %p71 = por %p69, %p70
    %s73 = sadd.s32 %s72, 1
    %p76 = scmp.eq.s32.totalorder %s17, 1
    %p77 = scmp.ne.s32.totalorder %s72, %s74
    %p78 = scmp.eq.s32.totalorder %s17, 0
    %p79 = por %p77, %p78
    %p80 = scmp.ne.s32.totalorder %s72, %s74
    %p81 = scmp.eq.s32.totalorder %s22, 1
    %p82 = por %p80, %p81
    %p83 = scmp.ne.s32.totalorder %s74, %s75
    %p84 = scmp.eq.s32.totalorder %s22, 0
    %p85 = por %p83, %p84
    %p86 = scmp.ne.s32.totalorder %s74, %s75
    %p87 = scmp.eq.s32.totalorder %s23, 1
    %p88 = por %p86, %p87
    %p90 = scmp.ne.s32.totalorder %s75, %s89
    %p91 = scmp.eq.s32.totalorder %s23, 0
    %p92 = por %p90, %p91
    %s94 = sadd.s32 %s93, 1
    %p97 = scmp.eq.s32.totalorder %s17, 1
    %p98 = scmp.ne.s32.totalorder %s93, %s95
    %p99 = scmp.eq.s32.totalorder %s17, 0
    %p100 = por %p98, %p99
    %p101 = scmp.ne.s32.totalorder %s93, %s95
    %p102 = scmp.eq.s32.totalorder %s22, 1
    %p103 = por %p101, %p102
    %p104 = scmp.ne.s32.totalorder %s95, %s96
    %p105 = scmp.eq.s32.totalorder %s22, 0
    %p106 = por %p104, %p105
    %p107 = scmp.ne.s32.totalorder %s95, %s96
    %p108 = scmp.eq.s32.totalorder %s23, 1
    %p109 = por %p107, %p108
    %p111 = scmp.ne.s32.totalorder %s96, %s110
    %p112 = scmp.eq.s32.totalorder %s23, 0
    %p113 = por %p111, %p112
    %s115 = sadd.s32 %s114, 1
    %p118 = scmp.eq.s32.totalorder %s17, 1
    %p119 = scmp.ne.s32.totalorder %s114, %s116
    %p120 = scmp.eq.s32.totalorder %s17, 0
    %p121 = por %p119, %p120
    %p122 = scmp.ne.s32.totalorder %s114, %s116
    %p123 = scmp.eq.s32.totalorder %s22, 1
    %p124 = por %p122, %p123
    %p125 = scmp.ne.s32.totalorder %s116, %s117
    %p126 = scmp.eq.s32.totalorder %s22, 0
    %p127 = por %p125, %p126
    %p128 = scmp.ne.s32.totalorder %s116, %s117
    %p129 = scmp.eq.s32.totalorder %s23, 1
    %p130 = por %p128, %p129
    %p132 = scmp.ne.s32.totalorder %s117, %s131
    %p133 = scmp.eq.s32.totalorder %s23, 0
    %p134 = por %p132, %p133
    %s136 = sadd.s32 %s135, 1
    %p139 = scmp.eq.s32.totalorder %s17, 1
    %p140 = scmp.ne.s32.totalorder %s135, %s137
    %p141 = scmp.eq.s32.totalorder %s17, 0
    %p142 = por %p140, %p141
    %p143 = scmp.ne.s32.totalorder %s135, %s137
    %p144 = scmp.eq.s32.totalorder %s22, 1
    %p145 = por %p143, %p144
    %p146 = scmp.ne.s32.totalorder %s137, %s138
    %p147 = scmp.eq.s32.totalorder %s22, 0
    %p148 = por %p146, %p147
    %p149 = scmp.ne.s32.totalorder %s137, %s138
    %p150 = scmp.eq.s32.totalorder %s23, 1
    %p151 = por %p149, %p150
    %p153 = scmp.ne.s32.totalorder %s138, %s152
    %p154 = scmp.eq.s32.totalorder %s23, 0
    %p155 = por %p153, %p154
    %s157 = sadd.s32 %s156, 1
    %p160 = scmp.eq.s32.totalorder %s17, 1
    %p161 = scmp.ne.s32.totalorder %s156, %s158
    %p162 = scmp.eq.s32.totalorder %s17, 0
    %p163 = por %p161, %p162
    %p164 = scmp.ne.s32.totalorder %s156, %s158
    %p165 = scmp.eq.s32.totalorder %s22, 1
    %p166 = por %p164, %p165
    %p167 = scmp.ne.s32.totalorder %s158, %s159
    %p168 = scmp.eq.s32.totalorder %s22, 0
    %p169 = por %p167, %p168
    %p170 = scmp.ne.s32.totalorder %s158, %s159
    %p171 = scmp.eq.s32.totalorder %s23, 1
    %p172 = por %p170, %p171
    %p174 = scmp.ne.s32.totalorder %s159, %s173
    %p175 = scmp.eq.s32.totalorder %s23, 0
    %p176 = por %p174, %p175
    %s178 = sadd.s32 %s177, 1
    %p181 = scmp.eq.s32.totalorder %s17, 1
    %p182 = scmp.ne.s32.totalorder %s177, %s179
    %p183 = scmp.eq.s32.totalorder %s17, 0
    %p184 = por %p182, %p183
    %p185 = scmp.ne.s32.totalorder %s177, %s179
    %p186 = scmp.eq.s32.totalorder %s22, 1
    %p187 = por %p185, %p186
    %p188 = scmp.ne.s32.totalorder %s179, %s180
    %p189 = scmp.eq.s32.totalorder %s22, 0
    %p190 = por %p188, %p189
    %p191 = scmp.ne.s32.totalorder %s179, %s180
    %p192 = scmp.eq.s32.totalorder %s23, 1
    %p193 = por %p191, %p192
    %p195 = scmp.ne.s32.totalorder %s180, %s194
    %p196 = scmp.eq.s32.totalorder %s23, 0
    %p197 = por %p195, %p196
    %s199 = sadd.s32 %s198, 1
    %p202 = scmp.eq.s32.totalorder %s17, 1
    %p203 = scmp.ne.s32.totalorder %s198, %s200
    %p204 = scmp.eq.s32.totalorder %s17, 0
    %p205 = por %p203, %p204
    %p206 = scmp.ne.s32.totalorder %s198, %s200
    %p207 = scmp.eq.s32.totalorder %s22, 1
    %p208 = por %p206, %p207
    %p209 = scmp.ne.s32.totalorder %s200, %s201
    %p210 = scmp.eq.s32.totalorder %s22, 0
    %p211 = por %p209, %p210
    %p212 = scmp.ne.s32.totalorder %s200, %s201
    %p213 = scmp.eq.s32.totalorder %s23, 1
    %p214 = por %p212, %p213
    %p216 = scmp.ne.s32.totalorder %s201, %s215
    %p217 = scmp.eq.s32.totalorder %s23, 0
    %p218 = por %p216, %p217
    %s220 = sadd.s32 %s219, 1
    %p223 = scmp.eq.s32.totalorder %s17, 1
    %p224 = scmp.ne.s32.totalorder %s219, %s221
    %p225 = scmp.eq.s32.totalorder %s17, 0
    %p226 = por %p224, %p225
    %p227 = scmp.ne.s32.totalorder %s219, %s221
    %p228 = scmp.eq.s32.totalorder %s22, 1
    %p229 = por %p227, %p228
    %p230 = scmp.ne.s32.totalorder %s221, %s222
    %p231 = scmp.eq.s32.totalorder %s22, 0
    %p232 = por %p230, %p231
    %p233 = scmp.ne.s32.totalorder %s221, %s222
    %p234 = scmp.eq.s32.totalorder %s23, 1
    %p235 = por %p233, %p234
    %p237 = scmp.ne.s32.totalorder %s222, %s236
    %p238 = scmp.eq.s32.totalorder %s23, 0
    %p239 = por %p237, %p238
    %s241 = sadd.s32 %s240, 1
    %p244 = scmp.eq.s32.totalorder %s17, 1
    %p245 = scmp.ne.s32.totalorder %s240, %s242
    %p246 = scmp.eq.s32.totalorder %s17, 0
    %p247 = por %p245, %p246
    %p248 = scmp.ne.s32.totalorder %s240, %s242
    %p249 = scmp.eq.s32.totalorder %s22, 1
    %p250 = por %p248, %p249
    %p251 = scmp.ne.s32.totalorder %s242, %s243
    %p252 = scmp.eq.s32.totalorder %s22, 0
    %p253 = por %p251, %p252
    %p254 = scmp.ne.s32.totalorder %s242, %s243
    %p255 = scmp.eq.s32.totalorder %s23, 1
    %p256 = por %p254, %p255
    %p258 = scmp.ne.s32.totalorder %s243, %s257
    %p259 = scmp.eq.s32.totalorder %s23, 0
    %p260 = por %p258, %p259
    %s261 = ssub.s32 %s17, %s24
    %p262 = scmp.eq.s32.totalorder %s261, 0
    %s264 = sadd.s32 %s263, 1
    %s265 = scalar_select %p262, %s263, %s264
    %p268 = pneg %p262
    %p269 = scmp.eq.s32.totalorder %s17, 1
    %p270 = por %p268, %p269
    %p271 = scmp.ne.s32.totalorder %s263, %s266
    %p272 = scmp.eq.s32.totalorder %s17, 0
    %p273 = por %p271, %p272
    %p274 = scmp.ne.s32.totalorder %s263, %s266
    %p275 = scmp.eq.s32.totalorder %s22, 1
    %p276 = por %p274, %p275
    %p277 = scmp.ne.s32.totalorder %s266, %s267
    %p278 = scmp.eq.s32.totalorder %s22, 0
    %p279 = por %p277, %p278
    %p280 = scmp.ne.s32.totalorder %s266, %s267
    %p281 = scmp.eq.s32.totalorder %s23, 1
    %p282 = por %p280, %p281
    %p284 = scmp.ne.s32.totalorder %s267, %s283
    %p285 = scmp.eq.s32.totalorder %s23, 0
    %p286 = por %p284, %p285
    %p287 = scmp.le.s32.totalorder 1, %s17
    %p288 = scmp.lt.s32.totalorder %s17, 3
    %p289 = pnand %p287, %p288
    %p290 = pneg %p289
    // Predicated region
    $region9: #{time_aggregator_forward.1} parent=5 // pred_check
      _
    $region10: #{time_aggregator_forward.1} parent=5 // pred_check_branch
      %292 = sbr.rel (%p289) target = $region12
    $region11: #{time_aggregator_forward.1} parent=5 // pred_region
      %s293 = ssub.s32 %s17, 1
      // Predicated region
      $region13: #{time_aggregator_forward.1} parent=11 // pred_check
        %p294 = pneg %p64
      $region14: #{time_aggregator_forward.1} parent=11 // pred_check_branch
        %296 = sbr.rel (%p294) target = $region16
      $region15: #{time_aggregator_forward.1} parent=11 // pred_region
        _
      $region16: #{time_aggregator_forward.1} parent=11 // pred_fallthru
        _
      // Predicated region
      $region17: #{time_aggregator_forward.1} parent=11 // pred_check
        %p297 = pneg %p85
      $region18: #{time_aggregator_forward.1} parent=11 // pred_check_branch
        %299 = sbr.rel (%p297) target = $region20
      $region19: #{time_aggregator_forward.1} parent=11 // pred_region
        _
      $region20: #{time_aggregator_forward.1} parent=11 // pred_fallthru
        _
      // Predicated region
      $region21: #{time_aggregator_forward.1} parent=11 // pred_check
        %p300 = pneg %p106
      $region22: #{time_aggregator_forward.1} parent=11 // pred_check_branch
        %302 = sbr.rel (%p300) target = $region24
      $region23: #{time_aggregator_forward.1} parent=11 // pred_region
        _
      $region24: #{time_aggregator_forward.1} parent=11 // pred_fallthru
        _
      // Predicated region
      $region25: #{time_aggregator_forward.1} parent=11 // pred_check
        %p303 = pneg %p127
      $region26: #{time_aggregator_forward.1} parent=11 // pred_check_branch
        %305 = sbr.rel (%p303) target = $region28
      $region27: #{time_aggregator_forward.1} parent=11 // pred_region
        _
      $region28: #{time_aggregator_forward.1} parent=11 // pred_fallthru
        _
      // Predicated region
      $region29: #{time_aggregator_forward.1} parent=11 // pred_check
        %p306 = pneg %p148
      $region30: #{time_aggregator_forward.1} parent=11 // pred_check_branch
        %308 = sbr.rel (%p306) target = $region32
      $region31: #{time_aggregator_forward.1} parent=11 // pred_region
        _
      $region32: #{time_aggregator_forward.1} parent=11 // pred_fallthru
        _
      // Predicated region
      $region33: #{time_aggregator_forward.1} parent=11 // pred_check
        %p309 = pneg %p169
      $region34: #{time_aggregator_forward.1} parent=11 // pred_check_branch
        %311 = sbr.rel (%p309) target = $region36
      $region35: #{time_aggregator_forward.1} parent=11 // pred_region
        _
      $region36: #{time_aggregator_forward.1} parent=11 // pred_fallthru
        _
      // Predicated region
      $region37: #{time_aggregator_forward.1} parent=11 // pred_check
        %p312 = pneg %p190
      $region38: #{time_aggregator_forward.1} parent=11 // pred_check_branch
        %314 = sbr.rel (%p312) target = $region40
      $region39: #{time_aggregator_forward.1} parent=11 // pred_region
        _
      $region40: #{time_aggregator_forward.1} parent=11 // pred_fallthru
        _
      // Predicated region
      $region41: #{time_aggregator_forward.1} parent=11 // pred_check
        %p315 = pneg %p211
      $region42: #{time_aggregator_forward.1} parent=11 // pred_check_branch
        %317 = sbr.rel (%p315) target = $region44
      $region43: #{time_aggregator_forward.1} parent=11 // pred_region
        _
      $region44: #{time_aggregator_forward.1} parent=11 // pred_fallthru
        _
      // Predicated region
      $region45: #{time_aggregator_forward.1} parent=11 // pred_check
        %p318 = pneg %p232
      $region46: #{time_aggregator_forward.1} parent=11 // pred_check_branch
        %320 = sbr.rel (%p318) target = $region48
      $region47: #{time_aggregator_forward.1} parent=11 // pred_region
        _
      $region48: #{time_aggregator_forward.1} parent=11 // pred_fallthru
        _
      // Predicated region
      $region49: #{time_aggregator_forward.1} parent=11 // pred_check
        %p321 = pneg %p253
      $region50: #{time_aggregator_forward.1} parent=11 // pred_check_branch
        %323 = sbr.rel (%p321) target = $region52
      $region51: #{time_aggregator_forward.1} parent=11 // pred_region
        _
      $region52: #{time_aggregator_forward.1} parent=11 // pred_fallthru
        _
    $region12: #{time_aggregator_forward.1} parent=5 // pred_fallthru
      _
    %p324 = scmp.lt.s32.totalorder %s17, 2
    // Predicated region
    $region53: #{time_aggregator_forward.1} parent=5 // pred_check
      %p325 = pneg %p324
    $region54: #{time_aggregator_forward.1} parent=5 // pred_check_branch
      %327 = sbr.rel (%p325) target = $region56
    $region55: #{time_aggregator_forward.1} parent=5 // pred_region
      // Predicated region
      $region57: #{time_aggregator_forward.1} parent=55 // pred_check
        %p328 = pneg %p37
      $region58: #{time_aggregator_forward.1} parent=55 // pred_check_branch
        %330 = sbr.rel (%p328) target = $region60
      $region59: #{time_aggregator_forward.1} parent=55 // pred_region
        %s331 = smul.u32 2, %s17
        %p332 = scmp.lt.s32.totalorder %s331, 3
        %s333 = scalar_select %p332, %s331, 3
        %s334 = smul.addr %s333, 8
        %s335 = scalar_lea.vmem %s0, %s334
        %s336 = smul.u32 2, %s17
      $region60: #{time_aggregator_forward.1} parent=55 // pred_fallthru
        _
    $region56: #{time_aggregator_forward.1} parent=5 // pred_fallthru
      _
    %p337 = scmp.le.s32.totalorder 1, %s17
    %p338 = scmp.lt.s32.totalorder %s17, 3
    %p339 = pnand %p337, %p338
    %p340 = pneg %p339
    // Predicated region
    $region61: #{time_aggregator_forward.1} parent=5 // pred_check
      _
    $region62: #{time_aggregator_forward.1} parent=5 // pred_check_branch
      %342 = sbr.rel (%p339) target = $region64
    $region63: #{time_aggregator_forward.1} parent=5 // pred_region
      %s343 = ssub.s32 %s17, 1
      %s344 = smul.u32 2, %s22
      %p345 = scmp.lt.s32.totalorder %s344, 3
      %s346 = scalar_select %p345, %s344, 3
      %s347 = smul.addr %s346, 8
      %s348 = scalar_lea.vmem %s0, %s347
      %p349 = pneg %p43
      %p350 = pneg %p40
      %p351 = pneg %p64
      %p352 = pneg %p61
      %p353 = pneg %p85
      %p354 = pneg %p82
      %p355 = pneg %p106
      %p356 = pneg %p103
      %p357 = pneg %p127
      %p358 = pneg %p124
      %p359 = pneg %p148
      %p360 = pneg %p145
      %p361 = pneg %p169
      %p362 = pneg %p166
      %p363 = pneg %p190
      %p364 = pneg %p187
      %p365 = pneg %p211
      %p366 = pneg %p208
      %p367 = pneg %p232
      %p368 = pneg %p229
      %p369 = pneg %p253
      %p370 = pneg %p250
      %p371 = pneg %p279
      %p372 = pneg %p276
      %s373 = smul.u32 2, %s22
      %p374 = scmp.lt.s32.totalorder %s373, 3
      %s375 = scalar_select %p374, %s373, 3
      %s376 = smul.addr %s375, 2
      %s377 = smul.addr %s376, 8
      %s378 = scalar_lea.vmem %s11, %s377
      %s379 = smul.u32 2, %s22
      %p380 = scmp.lt.s32.totalorder %s379, 3
      %s381 = scalar_select %p380, %s379, 3
      %s382 = smul.addr %s381, 8
      %s383 = scalar_lea.vmem %s0, %s382
      %s384 = smul.u32 2, %s22
      %s385 = smul.u32 2, %s22
      %p386 = scmp.lt.s32.totalorder %s385, 3
      %s387 = scalar_select %p386, %s385, 3
      %s388 = smul.addr %s387, 2
      %s389 = smul.addr %s388, 8
      %s390 = scalar_lea.vmem %s11, %s389
      %s391 = smul.u32 2, %s22
      %v392 = vld [vmem:[%s4] sm:$0xff]
      %v393 = vld [vmem:[%s4 + $0x8] sm:$0xff]
      %v394 = vld [vmem:[%s4 + $0x10] sm:$0xff]
      %v395 = vld [vmem:[%s4 + $0x18] sm:$0xff]
      %v396 = vld [vmem:[%s4 + $0x20] sm:$0xff]
      %v397 = vld [vmem:[%s4 + $0x28] sm:$0xff]
      %v398 = vld [vmem:[%s4 + $0x30] sm:$0xff]
      %v399 = vld [vmem:[%s4 + $0x38] sm:$0xff]
      %v400 = vld [vmem:[%s4 + $0x40] sm:$0xff]
      %v401 = vld [vmem:[%s4 + $0x48] sm:$0xff]
      %v402 = vld [vmem:[%s4 + $0x50] sm:$0xff]
      %v403 = vld [vmem:[%s4 + $0x58] sm:$0xff]
      %v404 = vld [vmem:[%s4 + $0x60] sm:$0xff]
      %v405 = vld [vmem:[%s4 + $0x68] sm:$0xff]
      %v406 = vld [vmem:[%s4 + $0x70] sm:$0xff]
      %v407 = vld [vmem:[%s4 + $0x78] sm:$0xff]
      %v408 = vld [vmem:[%s4 + $0x80] sm:$0xff]
      %v409 = vld [vmem:[%s4 + $0x88] sm:$0xff]
      %v410 = vld [vmem:[%s4 + $0x90] sm:$0xff]
      %v411 = vld [vmem:[%s4 + $0x98] sm:$0xff]
      %v412 = vld [vmem:[%s4 + $0xa0] sm:$0xff]
      %v413 = vld [vmem:[%s4 + $0xa8] sm:$0xff]
      %v414 = vld [vmem:[%s4 + $0xb0] sm:$0xff]
      %v415 = vld [vmem:[%s4 + $0xb8] sm:$0xff]
      %v416 = vld [vmem:[%s4 + $0xc0] sm:$0xff]
      %v417 = vld [vmem:[%s4 + $0xc8] sm:$0xff]
      %v418 = vld [vmem:[%s4 + $0xd0] sm:$0xff]
      %v419 = vld [vmem:[%s4 + $0xd8] sm:$0xff]
      %v420 = vld [vmem:[%s4 + $0xe0] sm:$0xff]
      %v421 = vld [vmem:[%s4 + $0xe8] sm:$0xff]
      %v422 = vld [vmem:[%s4 + $0xf0] sm:$0xff]
      %v423 = vld [vmem:[%s4 + $0xf8] sm:$0xff]
      %v424 = vld [vmem:[%s4 + $0x100] sm:$0xff]
      %v425 = vld [vmem:[%s4 + $0x108] sm:$0xff]
      %v426 = vld [vmem:[%s4 + $0x110] sm:$0xff]
      %v427 = vld [vmem:[%s4 + $0x118] sm:$0xff]
      %v428 = vld [vmem:[%s4 + $0x120] sm:$0xff]
      %v429 = vld [vmem:[%s4 + $0x128] sm:$0xff]
      %v430 = vld [vmem:[%s4 + $0x130] sm:$0xff]
      %v431 = vld [vmem:[%s4 + $0x138] sm:$0xff]
      %v432 = vld [vmem:[%s4 + $0x140] sm:$0xff]
      %v433 = vld [vmem:[%s4 + $0x148] sm:$0xff]
      %v434 = vld [vmem:[%s4 + $0x150] sm:$0xff]
      %v435 = vld [vmem:[%s4 + $0x158] sm:$0xff]
      %v436 = vld [vmem:[%s4 + $0x160] sm:$0xff]
      %v437 = vld [vmem:[%s4 + $0x168] sm:$0xff]
      %v438 = vld [vmem:[%s4 + $0x170] sm:$0xff]
      %v439 = vld [vmem:[%s4 + $0x178] sm:$0xff]
      %v440 = vld [vmem:[%s4 + $0x180] sm:$0xff]
      %v441 = vld [vmem:[%s4 + $0x188] sm:$0xff]
      %v442 = vld [vmem:[%s4 + $0x190] sm:$0xff]
      %v443 = vld [vmem:[%s4 + $0x198] sm:$0xff]
      %v444 = vld [vmem:[%s4 + $0x1a0] sm:$0xff]
      %v445 = vld [vmem:[%s4 + $0x1a8] sm:$0xff]
      %v446 = vld [vmem:[%s4 + $0x1b0] sm:$0xff]
      %v447 = vld [vmem:[%s4 + $0x1b8] sm:$0xff]
      %v448 = vld [vmem:[%s4 + $0x1c0] sm:$0xff]
      %v449 = vld [vmem:[%s4 + $0x1c8] sm:$0xff]
      %v450 = vld [vmem:[%s4 + $0x1d0] sm:$0xff]
      %v451 = vld [vmem:[%s4 + $0x1d8] sm:$0xff]
      %v452 = vld [vmem:[%s4 + $0x1e0] sm:$0xff]
      %v453 = vld [vmem:[%s4 + $0x1e8] sm:$0xff]
      %v454 = vld [vmem:[%s4 + $0x1f0] sm:$0xff]
      %v455 = vld [vmem:[%s4 + $0x1f8] sm:$0xff]
      %v456 = vld [vmem:[%s383] sm:$0xff]
      %v457 = vld [vmem:[%s383 + $0x8] sm:$0xff]
      %v458 = vld [vmem:[%s3] sm:$0xff]
      %v459 = vld [vmem:[%s3 + $0x8] sm:$0xff]
      %v460 = vld [vmem:[%s3 + $0x10] sm:$0xff]
      %v461 = vld [vmem:[%s1] sm:$0x1]
      %v462 = vlaneseq
      %v463 = vshrl.u32 %v462, 7
      %v464 = vsub.s32 0, %v463
      %v465 = vrot.slane %v461, %v464
      %vm466 = vcmask 195584
      %v468 = vsel %vm466, %v456, 0
      %v471 = vsel %vm466, %v457, 0
      %473 = vmatprep.subr.mxu0 0.0
      %474 = vmatpush1.msra.mxu0 %v458
      %475 = vmatprep.subr.mxu0 0.0
      %476 = vmatpush1.msra.mxu0 %v459
      %477 = vmatprep.subr.mxu0 0.0
      %478 = vmatpush1.msra.mxu0 %v460
      %479 = vmatprep.subr.mxu0 0.0
      %480 = vmatpush1.msra.mxu0 0.0
      %481 = vmatprep.subr.mxu0 0.0
      %482 = vmatpush1.msra.mxu0 0.0
      %483 = vmatprep.subr.mxu0 0.0
      %484 = vmatpush1.msra.mxu0 0.0
      %485 = vmatprep.subr.mxu0 0.0
      %486 = vmatpush1.msra.mxu0 0.0
      %487 = vmatprep.subr.mxu0 0.0
      %488 = vmatpush1.msra.mxu0 0.0
      %489 = vmatprep.subr.mxu0 0.0
      %490 = vmatpush1.msra.mxu0 0.0
      %491 = vmatprep.subr.mxu0 0.0
      %492 = vmatpush1.msra.mxu0 0.0
      %493 = vmatprep.subr.mxu0 0.0
      %494 = vmatpush1.msra.mxu0 0.0
      %495 = vmatprep.subr.mxu0 0.0
      %496 = vmatpush1.msra.mxu0 0.0
      %497 = vmatprep.subr.mxu0 0.0
      %498 = vmatpush1.msra.mxu0 0.0
      %499 = vmatprep.subr.mxu0 0.0
      %500 = vmatpush1.msra.mxu0 0.0
      %501 = vmatprep.subr.mxu0 0.0
      %502 = vmatpush1.msra.mxu0 0.0
      %503 = vmatprep.subr.mxu0 0.0
      %504 = vmatpush1.msra.mxu0 0.0
      %505 = vmatprep.subr.mxu0 0.0
      %506 = vmatpush1.msra.mxu0 0.0
      %507 = vmatprep.subr.mxu0 0.0
      %508 = vmatpush1.msra.mxu0 0.0
      %509 = vmatprep.subr.mxu0 0.0
      %510 = vmatpush1.msra.mxu0 0.0
      %511 = vmatprep.subr.mxu0 0.0
      %512 = vmatpush1.msra.mxu0 0.0
      %513 = vmatprep.subr.mxu0 0.0
      %514 = vmatpush1.msra.mxu0 0.0
      %515 = vmatprep.subr.mxu0 0.0
      %516 = vmatpush1.msra.mxu0 0.0
      %517 = vmatprep.subr.mxu0 0.0
      %518 = vmatpush1.msra.mxu0 0.0
      %519 = vmatprep.subr.mxu0 0.0
      %520 = vmatpush1.msra.mxu0 0.0
      %521 = vmatprep.subr.mxu0 0.0
      %522 = vmatpush1.msra.mxu0 0.0
      %523 = vmatprep.subr.mxu0 0.0
      %524 = vmatpush1.msra.mxu0 0.0
      %525 = vmatprep.subr.mxu0 0.0
      %526 = vmatpush1.msra.mxu0 0.0
      %527 = vmatprep.subr.mxu0 0.0
      %528 = vmatpush1.msra.mxu0 0.0
      %529 = vmatprep.subr.mxu0 0.0
      %530 = vmatpush1.msra.mxu0 0.0
      %531 = vmatprep.subr.mxu0 0.0
      %532 = vmatpush1.msra.mxu0 0.0
      %533 = vmatprep.subr.mxu0 0.0
      %534 = vmatpush1.msra.mxu0 0.0
      %535 = vmatprep.subr.mxu0 0.0
      %536 = vmatpush1.msra.mxu0 0.0
      %537 = vmatprep.mubr.f32.mxu0 0.0
      %538 = vmatmul.mubr.f32.gmra.mrb[0].mxu0 %v468
      %v539 = vpop.f32.mrb[0].mxu0
      %v540 = vadd.f32 %v465, %v539
      %v541 = vpop.f32.mrb[0].mxu0
      %542 = vmatprep.mubr.f32.mxu0 0.0
      %543 = vmatmul.mubr.f32.gmra.mrb[0].mxu0 %v471
      %v544 = vpop.f32.mrb[0].mxu0
      %v545 = vadd.f32 %v465, %v544
      %v546 = vpop.f32.mrb[0].mxu0
      %547 = vdwg.mxu0
      %v548 = vld [vmem:[%s1 + $0x1] sm:$0x1]
      %v549 = vld [vmem:[%s1 + $0x2] sm:$0x1]
      %vm550 = vcmask 261120
      %v551 = vsel %vm550, %v540, 0.0
      %552 = vadd.xlane.f32.xlu0 %v551
      %v553 = vpop.xlane.xlu0 %552
      %v554 = vsel %vm550, %v545, 0.0
      %555 = vadd.xlane.f32.xlu0 %v554
      %v556 = vpop.xlane.xlu0 %555
      %v557 = vrcp.pop 32.0
      %v558 = vmul.f32 %v553, %v557
      %v559 = vmul.f32 %v556, %v557
      %v560 = vmul.f32 %v540, %v540
      %v561 = vmul.f32 %v545, %v545
      %v562 = vsel %vm550, %v560, 0.0
      %563 = vadd.xlane.f32.xlu0 %v562
      %v564 = vpop.xlane.xlu0 %563
      %v565 = vsel %vm550, %v561, 0.0
      %566 = vadd.xlane.f32.xlu0 %v565
      %v567 = vpop.xlane.xlu0 %566
      %v568 = vmul.f32 %v564, %v557
      %v569 = vmul.f32 %v567, %v557
      %v570 = vsub.f32 %v540, %v558
      %v571 = vsub.f32 %v545, %v559
      %v572 = vmul.f32 %v558, %v558
      %v573 = vmul.f32 %v559, %v559
      %v574 = vsub.f32 %v568, %v572
      %v575 = vsub.f32 %v569, %v573
      %v576 = vadd.f32 %v574, 1e-05
      %v577 = vadd.f32 %v575, 1e-05
      %v578 = vrsqrt.pop %v576
      %v579 = vrsqrt.pop %v577
      %v580 = vmul.f32 %v570, %v578
      %v581 = vmul.f32 %v571, %v579
      %v582 = vlaneseq
      %v583 = vshrl.u32 %v582, 7
      %v584 = vsub.s32 0, %v583
      %v585 = vrot.slane %v548, %v584
      %v586 = vmul.f32 %v580, %v585
      %v587 = vmul.f32 %v581, %v585
      %v588 = vlaneseq
      %v589 = vshrl.u32 %v588, 7
      %v590 = vsub.s32 0, %v589
      %v591 = vrot.slane %v549, %v590
      %v592 = vadd.f32 %v586, %v591
      %v593 = vadd.f32 %v587, %v591
      %v594 = vmax.f32 %v592, 0.0
      %v595 = vmax.f32 %v593, 0.0
      %v596 = vld [vmem:[%s2] ss:$8 sm:$0x3]
      %v597 = vld [vmem:[%s1 + $0x3] sm:$0x1]
      %v598 = vld [vmem:[%s1 + $0x4] sm:$0x1]
      %s599 = scalar_lea.vmem %s2, 1
      %v600 = vld [vmem:[%s599] ss:$8 sm:$0x3]
      %s601 = scalar_lea.vmem %s2, 2
      %v602 = vld [vmem:[%s601] ss:$8 sm:$0x3]
      %s603 = scalar_lea.vmem %s2, 3
      %v604 = vld [vmem:[%s603] ss:$8 sm:$0x3]
      %s605 = scalar_lea.vmem %s2, 4
      %v606 = vld [vmem:[%s605] ss:$8 sm:$0x3]
      %s607 = scalar_lea.vmem %s2, 5
      %v608 = vld [vmem:[%s607] ss:$8 sm:$0x3]
      %v609 = vsel %vm550, %v594, 0.0
      %610 = vadd.xlane.f32.xlu0 %v609
      %v611 = vpop.xlane.xlu0 %610
      %v612 = vsel %vm550, %v595, 0.0
      %613 = vadd.xlane.f32.xlu0 %v612
      %v614 = vpop.xlane.xlu0 %613
      %v615 = vmul.f32 %v611, %v557
      %v616 = vmul.f32 %v614, %v557
      %v617 = vmul.f32 %v594, %v594
      %v618 = vmul.f32 %v595, %v595
      %v619 = vsel %vm550, %v617, 0.0
      %620 = vadd.xlane.f32.xlu0 %v619
      %v621 = vpop.xlane.xlu0 %620
      %v622 = vsel %vm550, %v618, 0.0
      %623 = vadd.xlane.f32.xlu0 %v622
      %v624 = vpop.xlane.xlu0 %623
      %v625 = vmul.f32 %v621, %v557
      %v626 = vmul.f32 %v624, %v557
      %v627 = vsub.f32 %v594, %v615
      %v628 = vsub.f32 %v595, %v616
      %v629 = vmul.f32 %v615, %v615
      %v630 = vmul.f32 %v616, %v616
      %v631 = vsub.f32 %v625, %v629
      %v632 = vsub.f32 %v626, %v630
      %v633 = vadd.f32 %v631, 1e-05
      %v634 = vadd.f32 %v632, 1e-05
      %v635 = vrsqrt.pop %v633
      %v636 = vrsqrt.pop %v634
      %v637 = vmul.f32 %v627, %v635
      %v638 = vmul.f32 %v628, %v636
      %v639 = vlaneseq
      %v640 = vshrl.u32 %v639, 7
      %v641 = vsub.s32 0, %v640
      %v642 = vrot.slane %v597, %v641
      %v643 = vmul.f32 %v637, %v642
      %v644 = vmul.f32 %v638, %v642
      %v645 = vlaneseq
      %v646 = vshrl.u32 %v645, 7
      %v647 = vsub.s32 0, %v646
      %v648 = vrot.slane %v598, %v647
      %v649 = vadd.f32 %v643, %v648
      %v650 = vadd.f32 %v644, %v648
      %v651 = vld [vmem:[%s5] sm:$0xff]
      %v652 = vld [vmem:[%s5 + $0x8] sm:$0xff]
      %v653 = vld [vmem:[%s5 + $0x10] sm:$0xff]
      %v654 = vld [vmem:[%s5 + $0x18] sm:$0xff]
      %v655 = vld [vmem:[%s5 + $0x20] sm:$0xff]
      %v656 = vld [vmem:[%s5 + $0x28] sm:$0xff]
      %v657 = vld [vmem:[%s5 + $0x30] sm:$0xff]
      %v658 = vld [vmem:[%s5 + $0x38] sm:$0xff]
      %v660 = vlaneseq
      %v661 = vshrl.u32 %v660, 7
      %v662 = vsub.s32 0, %v661
      %v663 = vrot.slane %v600, %v662
      %v664 = vlaneseq
      %v665 = vshrl.u32 %v664, 7
      %v666 = vsub.s32 1, %v665
      %v667 = vrot.slane %v600, %v666
      %v671 = vsel %vm550, %v649, 0
      %v674 = vsel %vm550, %v650, 0
      %676 = vmatprep.subr.mxu0 %v652
      %677 = vmatpush1.msra.mxu0 %v651
      %678 = vmatprep.subr.mxu0 %v654
      %679 = vmatpush1.msra.mxu0 %v653
      %680 = vmatprep.subr.mxu0 %v656
      %681 = vmatpush1.msra.mxu0 %v655
      %682 = vmatprep.subr.mxu0 %v658
      %683 = vmatpush1.msra.mxu0 %v657
      %684 = vmatprep.subr.mxu0 0.0
      %685 = vmatpush1.msra.mxu0 0.0
      %686 = vmatprep.subr.mxu0 0.0
      %687 = vmatpush1.msra.mxu0 0.0
      %688 = vmatprep.subr.mxu0 0.0
      %689 = vmatpush1.msra.mxu0 0.0
      %690 = vmatprep.subr.mxu0 0.0
      %691 = vmatpush1.msra.mxu0 0.0
      %692 = vmatprep.subr.mxu0 0.0
      %693 = vmatpush1.msra.mxu0 0.0
      %694 = vmatprep.subr.mxu0 0.0
      %695 = vmatpush1.msra.mxu0 0.0
      %696 = vmatprep.subr.mxu0 0.0
      %697 = vmatpush1.msra.mxu0 0.0
      %698 = vmatprep.subr.mxu0 0.0
      %699 = vmatpush1.msra.mxu0 0.0
      %700 = vmatprep.subr.mxu0 0.0
      %701 = vmatpush1.msra.mxu0 0.0
      %702 = vmatprep.subr.mxu0 0.0
      %703 = vmatpush1.msra.mxu0 0.0
      %704 = vmatprep.subr.mxu0 0.0
      %705 = vmatpush1.msra.mxu0 0.0
      %706 = vmatprep.subr.mxu0 0.0
      %707 = vmatpush1.msra.mxu0 0.0
      %708 = vmatprep.subr.mxu0 0.0
      %709 = vmatpush1.msra.mxu0 0.0
      %710 = vmatprep.subr.mxu0 0.0
      %711 = vmatpush1.msra.mxu0 0.0
      %712 = vmatprep.subr.mxu0 0.0
      %713 = vmatpush1.msra.mxu0 0.0
      %714 = vmatprep.subr.mxu0 0.0
      %715 = vmatpush1.msra.mxu0 0.0
      %716 = vmatprep.subr.mxu0 0.0
      %717 = vmatpush1.msra.mxu0 0.0
      %718 = vmatprep.subr.mxu0 0.0
      %719 = vmatpush1.msra.mxu0 0.0
      %720 = vmatprep.subr.mxu0 0.0
      %721 = vmatpush1.msra.mxu0 0.0
      %722 = vmatprep.subr.mxu0 0.0
      %723 = vmatpush1.msra.mxu0 0.0
      %724 = vmatprep.subr.mxu0 0.0
      %725 = vmatpush1.msra.mxu0 0.0
      %726 = vmatprep.subr.mxu0 0.0
      %727 = vmatpush1.msra.mxu0 0.0
      %728 = vmatprep.subr.mxu0 0.0
      %729 = vmatpush1.msra.mxu0 0.0
      %730 = vmatprep.subr.mxu0 0.0
      %731 = vmatpush1.msra.mxu0 0.0
      %732 = vmatprep.subr.mxu0 0.0
      %733 = vmatpush1.msra.mxu0 0.0
      %734 = vmatprep.subr.mxu0 0.0
      %735 = vmatpush1.msra.mxu0 0.0
      %736 = vmatprep.subr.mxu0 0.0
      %737 = vmatpush1.msra.mxu0 0.0
      %738 = vmatprep.subr.mxu0 0.0
      %739 = vmatpush1.msra.mxu0 0.0
      %740 = vmatprep.mubr.f32.mxu0 0.0
      %741 = vmatmul.mubr.f32.gmra.mrb[0].mxu0 %v671
      %v742 = vpop.f32.mrb[0].mxu0
      %v743 = vadd.f32 %v663, %v742
      %v744 = vpop.f32.mrb[0].mxu0
      %v745 = vadd.f32 %v667, %v744
      %746 = vmatprep.mubr.f32.mxu0 0.0
      %747 = vmatmul.mubr.f32.gmra.mrb[0].mxu0 %v674
      %v748 = vpop.f32.mrb[0].mxu0
      %v749 = vadd.f32 %v663, %v748
      %v750 = vpop.f32.mrb[0].mxu0
      %v751 = vadd.f32 %v667, %v750
      %752 = vdwg.mxu0
      %v754 = vlaneseq
      %v755 = vshrl.u32 %v754, 7
      %v756 = vsub.s32 0, %v755
      %v757 = vrot.slane %v596, %v756
      %v758 = vlaneseq
      %v759 = vshrl.u32 %v758, 7
      %v760 = vsub.s32 1, %v759
      %v761 = vrot.slane %v596, %v760
      %v764 = vadd.f32 %v757, %v743
      %v765 = vadd.f32 %v761, %v745
      %v766 = vadd.f32 %v757, %v749
      %v767 = vadd.f32 %v761, %v751
      %768 = vmatprep.subr.mxu0 %v393
      %769 = vmatpush1.msra.mxu0 %v392
      %770 = vmatprep.subr.mxu0 %v395
      %771 = vmatpush1.msra.mxu0 %v394
      %772 = vmatprep.subr.mxu0 %v397
      %773 = vmatpush1.msra.mxu0 %v396
      %774 = vmatprep.subr.mxu0 %v399
      %775 = vmatpush1.msra.mxu0 %v398
      %776 = vmatprep.subr.mxu0 %v401
      %777 = vmatpush1.msra.mxu0 %v400
      %778 = vmatprep.subr.mxu0 %v403
      %779 = vmatpush1.msra.mxu0 %v402
      %780 = vmatprep.subr.mxu0 %v405
      %781 = vmatpush1.msra.mxu0 %v404
      %782 = vmatprep.subr.mxu0 %v407
      %783 = vmatpush1.msra.mxu0 %v406
      %784 = vmatprep.subr.mxu0 %v409
      %785 = vmatpush1.msra.mxu0 %v408
      %786 = vmatprep.subr.mxu0 %v411
      %787 = vmatpush1.msra.mxu0 %v410
      %788 = vmatprep.subr.mxu0 %v413
      %789 = vmatpush1.msra.mxu0 %v412
      %790 = vmatprep.subr.mxu0 %v415
      %791 = vmatpush1.msra.mxu0 %v414
      %792 = vmatprep.subr.mxu0 %v417
      %793 = vmatpush1.msra.mxu0 %v416
      %794 = vmatprep.subr.mxu0 %v419
      %795 = vmatpush1.msra.mxu0 %v418
      %796 = vmatprep.subr.mxu0 %v421
      %797 = vmatpush1.msra.mxu0 %v420
      %798 = vmatprep.subr.mxu0 %v423
      %799 = vmatpush1.msra.mxu0 %v422
      %800 = vmatprep.subr.mxu0 %v425
      %801 = vmatpush1.msra.mxu0 %v424
      %802 = vmatprep.subr.mxu0 %v427
      %803 = vmatpush1.msra.mxu0 %v426
      %804 = vmatprep.subr.mxu0 %v429
      %805 = vmatpush1.msra.mxu0 %v428
      %806 = vmatprep.subr.mxu0 %v431
      %807 = vmatpush1.msra.mxu0 %v430
      %808 = vmatprep.subr.mxu0 %v433
      %809 = vmatpush1.msra.mxu0 %v432
      %810 = vmatprep.subr.mxu0 %v435
      %811 = vmatpush1.msra.mxu0 %v434
      %812 = vmatprep.subr.mxu0 %v437
      %813 = vmatpush1.msra.mxu0 %v436
      %814 = vmatprep.subr.mxu0 %v439
      %815 = vmatpush1.msra.mxu0 %v438
      %816 = vmatprep.subr.mxu0 %v441
      %817 = vmatpush1.msra.mxu0 %v440
      %818 = vmatprep.subr.mxu0 %v443
      %819 = vmatpush1.msra.mxu0 %v442
      %820 = vmatprep.subr.mxu0 %v445
      %821 = vmatpush1.msra.mxu0 %v444
      %822 = vmatprep.subr.mxu0 %v447
      %823 = vmatpush1.msra.mxu0 %v446
      %824 = vmatprep.subr.mxu0 %v449
      %825 = vmatpush1.msra.mxu0 %v448
      %826 = vmatprep.subr.mxu0 %v451
      %827 = vmatpush1.msra.mxu0 %v450
      %828 = vmatprep.subr.mxu0 %v453
      %829 = vmatpush1.msra.mxu0 %v452
      %830 = vmatprep.subr.mxu0 %v455
      %831 = vmatpush1.msra.mxu0 %v454
      %832 = vmatprep.mubr.f32.mxu0 %v765
      %833 = vmatmul.mubr.f32.gmra.mrb[0].mxu0 %v764
      %v834 = vpop.f32.mrb[0].mxu0
      %v835 = vadd.f32 0.0, %v834
      %v836 = vpop.f32.mrb[0].mxu0
      %v837 = vadd.f32 0.0, %v836
      %838 = vmatprep.mubr.f32.mxu0 %v767
      %839 = vmatmul.mubr.f32.gmra.mrb[0].mxu0 %v766
      %v840 = vpop.f32.mrb[0].mxu0
      %v841 = vadd.f32 0.0, %v840
      %v842 = vpop.f32.mrb[0].mxu0
      %v843 = vadd.f32 0.0, %v842
      %844 = vdwg.mxu0
      %v845 = vmul.f32 %v764, %v764
      %v846 = vmul.f32 %v765, %v765
      %v847 = vmul.f32 %v766, %v766
      %v848 = vmul.f32 %v767, %v767
      %849 = vmatprep.subr.mxu0 %v393
      %850 = vmatpush1.msra.mxu0 %v392
      %851 = vmatprep.subr.mxu0 %v395
      %852 = vmatpush1.msra.mxu0 %v394
      %853 = vmatprep.subr.mxu0 %v397
      %854 = vmatpush1.msra.mxu0 %v396
      %855 = vmatprep.subr.mxu0 %v399
      %856 = vmatpush1.msra.mxu0 %v398
      %857 = vmatprep.subr.mxu0 %v401
      %858 = vmatpush1.msra.mxu0 %v400
      %859 = vmatprep.subr.mxu0 %v403
      %860 = vmatpush1.msra.mxu0 %v402
      %861 = vmatprep.subr.mxu0 %v405
      %862 = vmatpush1.msra.mxu0 %v404
      %863 = vmatprep.subr.mxu0 %v407
      %864 = vmatpush1.msra.mxu0 %v406
      %865 = vmatprep.subr.mxu0 %v409
      %866 = vmatpush1.msra.mxu0 %v408
      %867 = vmatprep.subr.mxu0 %v411
      %868 = vmatpush1.msra.mxu0 %v410
      %869 = vmatprep.subr.mxu0 %v413
      %870 = vmatpush1.msra.mxu0 %v412
      %871 = vmatprep.subr.mxu0 %v415
      %872 = vmatpush1.msra.mxu0 %v414
      %873 = vmatprep.subr.mxu0 %v417
      %874 = vmatpush1.msra.mxu0 %v416
      %875 = vmatprep.subr.mxu0 %v419
      %876 = vmatpush1.msra.mxu0 %v418
      %877 = vmatprep.subr.mxu0 %v421
      %878 = vmatpush1.msra.mxu0 %v420
      %879 = vmatprep.subr.mxu0 %v423
      %880 = vmatpush1.msra.mxu0 %v422
      %881 = vmatprep.subr.mxu0 %v425
      %882 = vmatpush1.msra.mxu0 %v424
      %883 = vmatprep.subr.mxu0 %v427
      %884 = vmatpush1.msra.mxu0 %v426
      %885 = vmatprep.subr.mxu0 %v429
      %886 = vmatpush1.msra.mxu0 %v428
      %887 = vmatprep.subr.mxu0 %v431
      %888 = vmatpush1.msra.mxu0 %v430
      %889 = vmatprep.subr.mxu0 %v433
      %890 = vmatpush1.msra.mxu0 %v432
      %891 = vmatprep.subr.mxu0 %v435
      %892 = vmatpush1.msra.mxu0 %v434
      %893 = vmatprep.subr.mxu0 %v437
      %894 = vmatpush1.msra.mxu0 %v436
      %895 = vmatprep.subr.mxu0 %v439
      %896 = vmatpush1.msra.mxu0 %v438
      %897 = vmatprep.subr.mxu0 %v441
      %898 = vmatpush1.msra.mxu0 %v440
      %899 = vmatprep.subr.mxu0 %v443
      %900 = vmatpush1.msra.mxu0 %v442
      %901 = vmatprep.subr.mxu0 %v445
      %902 = vmatpush1.msra.mxu0 %v444
      %903 = vmatprep.subr.mxu0 %v447
      %904 = vmatpush1.msra.mxu0 %v446
      %905 = vmatprep.subr.mxu0 %v449
      %906 = vmatpush1.msra.mxu0 %v448
      %907 = vmatprep.subr.mxu0 %v451
      %908 = vmatpush1.msra.mxu0 %v450
      %909 = vmatprep.subr.mxu0 %v453
      %910 = vmatpush1.msra.mxu0 %v452
      %911 = vmatprep.subr.mxu0 %v455
      %912 = vmatpush1.msra.mxu0 %v454
      %913 = vmatprep.mubr.f32.mxu0 %v846
      %914 = vmatmul.mubr.f32.gmra.mrb[0].mxu0 %v845
      %v915 = vpop.f32.mrb[0].mxu0
      %v916 = vadd.f32 0.0, %v915
      %v917 = vpop.f32.mrb[0].mxu0
      %v918 = vadd.f32 0.0, %v917
      %919 = vmatprep.mubr.f32.mxu0 %v848
      %920 = vmatmul.mubr.f32.gmra.mrb[0].mxu0 %v847
      %v921 = vpop.f32.mrb[0].mxu0
      %v922 = vadd.f32 0.0, %v921
      %v923 = vpop.f32.mrb[0].mxu0
      %v924 = vadd.f32 0.0, %v923
      %925 = vdwg.mxu0
      %v926 = vsub.f32 %v764, %v835
      %v927 = vsub.f32 %v765, %v837
      %v928 = vsub.f32 %v766, %v841
      %v929 = vsub.f32 %v767, %v843
      %v930 = vmul.f32 %v835, %v835
      %v931 = vmul.f32 %v837, %v837
      %v932 = vmul.f32 %v841, %v841
      %v933 = vmul.f32 %v843, %v843
      %v934 = vsub.f32 %v916, %v930
      %v935 = vsub.f32 %v918, %v931
      %v936 = vsub.f32 %v922, %v932
      %v937 = vsub.f32 %v924, %v933
      %v938 = vadd.f32 %v934, 1e-05
      %v939 = vadd.f32 %v935, 1e-05
      %v940 = vadd.f32 %v936, 1e-05
      %v941 = vadd.f32 %v937, 1e-05
      %v942 = vrsqrt.pop %v938
      %v943 = vrsqrt.pop %v939
      %v944 = vrsqrt.pop %v940
      %v945 = vrsqrt.pop %v941
      %v946 = vmul.f32 %v926, %v942
      %v947 = vmul.f32 %v927, %v943
      %v948 = vmul.f32 %v928, %v944
      %v949 = vmul.f32 %v929, %v945
      %v951 = vlaneseq
      %v952 = vshrl.u32 %v951, 7
      %v953 = vsub.s32 0, %v952
      %v954 = vrot.slane %v602, %v953
      %v955 = vlaneseq
      %v956 = vshrl.u32 %v955, 7
      %v957 = vsub.s32 1, %v956
      %v958 = vrot.slane %v602, %v957
      %v961 = vmul.f32 %v946, %v954
      %v962 = vmul.f32 %v947, %v958
      %v963 = vmul.f32 %v948, %v954
      %v964 = vmul.f32 %v949, %v958
      %v966 = vlaneseq
      %v967 = vshrl.u32 %v966, 7
      %v968 = vsub.s32 0, %v967
      %v969 = vrot.slane %v604, %v968
      %v970 = vlaneseq
      %v971 = vshrl.u32 %v970, 7
      %v972 = vsub.s32 1, %v971
      %v973 = vrot.slane %v604, %v972
      %v976 = vadd.f32 %v961, %v969
      %v977 = vadd.f32 %v962, %v973
      %v978 = vadd.f32 %v963, %v969
      %v979 = vadd.f32 %v964, %v973
      %v980 = vld [vmem:[%s6] sm:$0xff]
      %v981 = vld [vmem:[%s6 + $0x8] sm:$0xff]
      %v982 = vld [vmem:[%s6 + $0x10] sm:$0xff]
      %v983 = vld [vmem:[%s6 + $0x18] sm:$0xff]
      %v984 = vld [vmem:[%s6 + $0x20] sm:$0xff]
      %v985 = vld [vmem:[%s6 + $0x28] sm:$0xff]
      %v986 = vld [vmem:[%s6 + $0x30] sm:$0xff]
      %v987 = vld [vmem:[%s6 + $0x38] sm:$0xff]
      %v988 = vld [vmem:[%s6 + $0x40] sm:$0xff]
      %v989 = vld [vmem:[%s6 + $0x48] sm:$0xff]
      %v990 = vld [vmem:[%s6 + $0x50] sm:$0xff]
      %v991 = vld [vmem:[%s6 + $0x58] sm:$0xff]
      %v992 = vld [vmem:[%s6 + $0x60] sm:$0xff]
      %v993 = vld [vmem:[%s6 + $0x68] sm:$0xff]
      %v994 = vld [vmem:[%s6 + $0x70] sm:$0xff]
      %v995 = vld [vmem:[%s6 + $0x78] sm:$0xff]
      %v996 = vld [vmem:[%s6 + $0x80] sm:$0xff]
      %v997 = vld [vmem:[%s6 + $0x88] sm:$0xff]
      %v998 = vld [vmem:[%s6 + $0x90] sm:$0xff]
      %v999 = vld [vmem:[%s6 + $0x98] sm:$0xff]
      %v1000 = vld [vmem:[%s6 + $0xa0] sm:$0xff]
      %v1001 = vld [vmem:[%s6 + $0xa8] sm:$0xff]
      %v1002 = vld [vmem:[%s6 + $0xb0] sm:$0xff]
      %v1003 = vld [vmem:[%s6 + $0xb8] sm:$0xff]
      %v1004 = vld [vmem:[%s6 + $0xc0] sm:$0xff]
      %v1005 = vld [vmem:[%s6 + $0xc8] sm:$0xff]
      %v1006 = vld [vmem:[%s6 + $0xd0] sm:$0xff]
      %v1007 = vld [vmem:[%s6 + $0xd8] sm:$0xff]
      %v1008 = vld [vmem:[%s6 + $0xe0] sm:$0xff]
      %v1009 = vld [vmem:[%s6 + $0xe8] sm:$0xff]
      %v1010 = vld [vmem:[%s6 + $0xf0] sm:$0xff]
      %v1011 = vld [vmem:[%s6 + $0xf8] sm:$0xff]
      %v1012 = vld [vmem:[%s6 + $0x100] sm:$0xff]
      %v1013 = vld [vmem:[%s6 + $0x108] sm:$0xff]
      %v1014 = vld [vmem:[%s6 + $0x110] sm:$0xff]
      %v1015 = vld [vmem:[%s6 + $0x118] sm:$0xff]
      %v1016 = vld [vmem:[%s6 + $0x120] sm:$0xff]
      %v1017 = vld [vmem:[%s6 + $0x128] sm:$0xff]
      %v1018 = vld [vmem:[%s6 + $0x130] sm:$0xff]
      %v1019 = vld [vmem:[%s6 + $0x138] sm:$0xff]
      %v1020 = vld [vmem:[%s6 + $0x140] sm:$0xff]
      %v1021 = vld [vmem:[%s6 + $0x148] sm:$0xff]
      %v1022 = vld [vmem:[%s6 + $0x150] sm:$0xff]
      %v1023 = vld [vmem:[%s6 + $0x158] sm:$0xff]
      %v1024 = vld [vmem:[%s6 + $0x160] sm:$0xff]
      %v1025 = vld [vmem:[%s6 + $0x168] sm:$0xff]
      %v1026 = vld [vmem:[%s6 + $0x170] sm:$0xff]
      %v1027 = vld [vmem:[%s6 + $0x178] sm:$0xff]
      %v1028 = vld [vmem:[%s6 + $0x180] sm:$0xff]
      %v1029 = vld [vmem:[%s6 + $0x188] sm:$0xff]
      %v1030 = vld [vmem:[%s6 + $0x190] sm:$0xff]
      %v1031 = vld [vmem:[%s6 + $0x198] sm:$0xff]
      %v1032 = vld [vmem:[%s6 + $0x1a0] sm:$0xff]
      %v1033 = vld [vmem:[%s6 + $0x1a8] sm:$0xff]
      %v1034 = vld [vmem:[%s6 + $0x1b0] sm:$0xff]
      %v1035 = vld [vmem:[%s6 + $0x1b8] sm:$0xff]
      %v1036 = vld [vmem:[%s6 + $0x1c0] sm:$0xff]
      %v1037 = vld [vmem:[%s6 + $0x1c8] sm:$0xff]
      %v1038 = vld [vmem:[%s6 + $0x1d0] sm:$0xff]
      %v1039 = vld [vmem:[%s6 + $0x1d8] sm:$0xff]
      %v1040 = vld [vmem:[%s6 + $0x1e0] sm:$0xff]
      %v1041 = vld [vmem:[%s6 + $0x1e8] sm:$0xff]
      %v1042 = vld [vmem:[%s6 + $0x1f0] sm:$0xff]
      %v1043 = vld [vmem:[%s6 + $0x1f8] sm:$0xff]
      %v1045 = vlaneseq
      %v1046 = vshrl.u32 %v1045, 7
      %v1047 = vsub.s32 0, %v1046
      %v1048 = vrot.slane %v606, %v1047
      %v1049 = vlaneseq
      %v1050 = vshrl.u32 %v1049, 7
      %v1051 = vsub.s32 1, %v1050
      %v1052 = vrot.slane %v606, %v1051
      %1055 = vmatprep.subr.mxu0 %v981
      %1056 = vmatpush1.msra.mxu0 %v980
      %1057 = vmatprep.subr.mxu0 %v983
      %1058 = vmatpush1.msra.mxu0 %v982
      %1059 = vmatprep.subr.mxu0 %v985
      %1060 = vmatpush1.msra.mxu0 %v984
      %1061 = vmatprep.subr.mxu0 %v987
      %1062 = vmatpush1.msra.mxu0 %v986
      %1063 = vmatprep.subr.mxu0 %v989
      %1064 = vmatpush1.msra.mxu0 %v988
      %1065 = vmatprep.subr.mxu0 %v991
      %1066 = vmatpush1.msra.mxu0 %v990
      %1067 = vmatprep.subr.mxu0 %v993
      %1068 = vmatpush1.msra.mxu0 %v992
      %1069 = vmatprep.subr.mxu0 %v995
      %1070 = vmatpush1.msra.mxu0 %v994
      %1071 = vmatprep.subr.mxu0 %v997
      %1072 = vmatpush1.msra.mxu0 %v996
      %1073 = vmatprep.subr.mxu0 %v999
      %1074 = vmatpush1.msra.mxu0 %v998
      %1075 = vmatprep.subr.mxu0 %v1001
      %1076 = vmatpush1.msra.mxu0 %v1000
      %1077 = vmatprep.subr.mxu0 %v1003
      %1078 = vmatpush1.msra.mxu0 %v1002
      %1079 = vmatprep.subr.mxu0 %v1005
      %1080 = vmatpush1.msra.mxu0 %v1004
      %1081 = vmatprep.subr.mxu0 %v1007
      %1082 = vmatpush1.msra.mxu0 %v1006
      %1083 = vmatprep.subr.mxu0 %v1009
      %1084 = vmatpush1.msra.mxu0 %v1008
      %1085 = vmatprep.subr.mxu0 %v1011
      %1086 = vmatpush1.msra.mxu0 %v1010
      %1087 = vmatprep.subr.mxu0 %v1013
      %1088 = vmatpush1.msra.mxu0 %v1012
      %1089 = vmatprep.subr.mxu0 %v1015
      %1090 = vmatpush1.msra.mxu0 %v1014
      %1091 = vmatprep.subr.mxu0 %v1017
      %1092 = vmatpush1.msra.mxu0 %v1016
      %1093 = vmatprep.subr.mxu0 %v1019
      %1094 = vmatpush1.msra.mxu0 %v1018
      %1095 = vmatprep.subr.mxu0 %v1021
      %1096 = vmatpush1.msra.mxu0 %v1020
      %1097 = vmatprep.subr.mxu0 %v1023
      %1098 = vmatpush1.msra.mxu0 %v1022
      %1099 = vmatprep.subr.mxu0 %v1025
      %1100 = vmatpush1.msra.mxu0 %v1024
      %1101 = vmatprep.subr.mxu0 %v1027
      %1102 = vmatpush1.msra.mxu0 %v1026
      %1103 = vmatprep.subr.mxu0 %v1029
      %1104 = vmatpush1.msra.mxu0 %v1028
      %1105 = vmatprep.subr.mxu0 %v1031
      %1106 = vmatpush1.msra.mxu0 %v1030
      %1107 = vmatprep.subr.mxu0 %v1033
      %1108 = vmatpush1.msra.mxu0 %v1032
      %1109 = vmatprep.subr.mxu0 %v1035
      %1110 = vmatpush1.msra.mxu0 %v1034
      %1111 = vmatprep.subr.mxu0 %v1037
      %1112 = vmatpush1.msra.mxu0 %v1036
      %1113 = vmatprep.subr.mxu0 %v1039
      %1114 = vmatpush1.msra.mxu0 %v1038
      %1115 = vmatprep.subr.mxu0 %v1041
      %1116 = vmatpush1.msra.mxu0 %v1040
      %1117 = vmatprep.subr.mxu0 %v1043
      %1118 = vmatpush1.msra.mxu0 %v1042
      %1119 = vmatprep.mubr.f32.mxu0 %v977
      %1120 = vmatmul.mubr.f32.gmra.mrb[0].mxu0 %v976
      %v1121 = vpop.f32.mrb[0].mxu0
      %v1122 = vadd.f32 %v1048, %v1121
      %v1123 = vpop.f32.mrb[0].mxu0
      %v1124 = vadd.f32 %v1052, %v1123
      %1125 = vmatprep.mubr.f32.mxu0 %v979
      %1126 = vmatmul.mubr.f32.gmra.mrb[0].mxu0 %v978
      %v1127 = vpop.f32.mrb[0].mxu0
      %v1128 = vadd.f32 %v1048, %v1127
      %v1129 = vpop.f32.mrb[0].mxu0
      %v1130 = vadd.f32 %v1052, %v1129
      %1131 = vdwg.mxu0
      %v1132 = vmul.f32 %v1122, 0.5
      %v1133 = vmul.f32 %v1124, 0.5
      %v1134 = vmul.f32 %v1128, 0.5
      %v1135 = vmul.f32 %v1130, 0.5
      %v1136 = vmul.f32 %v1122, 0.70710677
      %v1137 = vmul.f32 %v1124, 0.70710677
      %v1138 = vmul.f32 %v1128, 0.70710677
      %v1139 = vmul.f32 %v1130, 0.70710677
      %v1140 = verf.f32.pop %v1136
      %v1141 = verf.f32.pop %v1137
      %v1142 = verf.f32.pop %v1138
      %v1143 = verf.f32.pop %v1139
      %v1144 = vadd.f32 %v1140, 1.0
      %v1145 = vadd.f32 %v1141, 1.0
      %v1146 = vadd.f32 %v1142, 1.0
      %v1147 = vadd.f32 %v1143, 1.0
      %v1148 = vmul.f32 %v1132, %v1144
      %v1149 = vmul.f32 %v1133, %v1145
      %v1150 = vmul.f32 %v1134, %v1146
      %v1151 = vmul.f32 %v1135, %v1147
      %v1152 = vld [vmem:[%s7] sm:$0xff]
      %v1153 = vld [vmem:[%s7 + $0x8] sm:$0xff]
      %v1154 = vld [vmem:[%s7 + $0x10] sm:$0xff]
      %v1155 = vld [vmem:[%s7 + $0x18] sm:$0xff]
      %v1156 = vld [vmem:[%s7 + $0x20] sm:$0xff]
      %v1157 = vld [vmem:[%s7 + $0x28] sm:$0xff]
      %v1158 = vld [vmem:[%s7 + $0x30] sm:$0xff]
      %v1159 = vld [vmem:[%s7 + $0x38] sm:$0xff]
      %v1160 = vld [vmem:[%s7 + $0x40] sm:$0xff]
      %v1161 = vld [vmem:[%s7 + $0x48] sm:$0xff]
      %v1162 = vld [vmem:[%s7 + $0x50] sm:$0xff]
      %v1163 = vld [vmem:[%s7 + $0x58] sm:$0xff]
      %v1164 = vld [vmem:[%s7 + $0x60] sm:$0xff]
      %v1165 = vld [vmem:[%s7 + $0x68] sm:$0xff]
      %v1166 = vld [vmem:[%s7 + $0x70] sm:$0xff]
      %v1167 = vld [vmem:[%s7 + $0x78] sm:$0xff]
      %v1168 = vld [vmem:[%s7 + $0x80] sm:$0xff]
      %v1169 = vld [vmem:[%s7 + $0x88] sm:$0xff]
      %v1170 = vld [vmem:[%s7 + $0x90] sm:$0xff]
      %v1171 = vld [vmem:[%s7 + $0x98] sm:$0xff]
      %v1172 = vld [vmem:[%s7 + $0xa0] sm:$0xff]
      %v1173 = vld [vmem:[%s7 + $0xa8] sm:$0xff]
      %v1174 = vld [vmem:[%s7 + $0xb0] sm:$0xff]
      %v1175 = vld [vmem:[%s7 + $0xb8] sm:$0xff]
      %v1176 = vld [vmem:[%s7 + $0xc0] sm:$0xff]
      %v1177 = vld [vmem:[%s7 + $0xc8] sm:$0xff]
      %v1178 = vld [vmem:[%s7 + $0xd0] sm:$0xff]
      %v1179 = vld [vmem:[%s7 + $0xd8] sm:$0xff]
      %v1180 = vld [vmem:[%s7 + $0xe0] sm:$0xff]
      %v1181 = vld [vmem:[%s7 + $0xe8] sm:$0xff]
      %v1182 = vld [vmem:[%s7 + $0xf0] sm:$0xff]
      %v1183 = vld [vmem:[%s7 + $0xf8] sm:$0xff]
      %v1184 = vld [vmem:[%s7 + $0x100] sm:$0xff]
      %v1185 = vld [vmem:[%s7 + $0x108] sm:$0xff]
      %v1186 = vld [vmem:[%s7 + $0x110] sm:$0xff]
      %v1187 = vld [vmem:[%s7 + $0x118] sm:$0xff]
      %v1188 = vld [vmem:[%s7 + $0x120] sm:$0xff]
      %v1189 = vld [vmem:[%s7 + $0x128] sm:$0xff]
      %v1190 = vld [vmem:[%s7 + $0x130] sm:$0xff]
      %v1191 = vld [vmem:[%s7 + $0x138] sm:$0xff]
      %v1192 = vld [vmem:[%s7 + $0x140] sm:$0xff]
      %v1193 = vld [vmem:[%s7 + $0x148] sm:$0xff]
      %v1194 = vld [vmem:[%s7 + $0x150] sm:$0xff]
      %v1195 = vld [vmem:[%s7 + $0x158] sm:$0xff]
      %v1196 = vld [vmem:[%s7 + $0x160] sm:$0xff]
      %v1197 = vld [vmem:[%s7 + $0x168] sm:$0xff]
      %v1198 = vld [vmem:[%s7 + $0x170] sm:$0xff]
      %v1199 = vld [vmem:[%s7 + $0x178] sm:$0xff]
      %v1200 = vld [vmem:[%s7 + $0x180] sm:$0xff]
      %v1201 = vld [vmem:[%s7 + $0x188] sm:$0xff]
      %v1202 = vld [vmem:[%s7 + $0x190] sm:$0xff]
      %v1203 = vld [vmem:[%s7 + $0x198] sm:$0xff]
      %v1204 = vld [vmem:[%s7 + $0x1a0] sm:$0xff]
      %v1205 = vld [vmem:[%s7 + $0x1a8] sm:$0xff]
      %v1206 = vld [vmem:[%s7 + $0x1b0] sm:$0xff]
      %v1207 = vld [vmem:[%s7 + $0x1b8] sm:$0xff]
      %v1208 = vld [vmem:[%s7 + $0x1c0] sm:$0xff]
      %v1209 = vld [vmem:[%s7 + $0x1c8] sm:$0xff]
      %v1210 = vld [vmem:[%s7 + $0x1d0] sm:$0xff]
      %v1211 = vld [vmem:[%s7 + $0x1d8] sm:$0xff]
      %v1212 = vld [vmem:[%s7 + $0x1e0] sm:$0xff]
      %v1213 = vld [vmem:[%s7 + $0x1e8] sm:$0xff]
      %v1214 = vld [vmem:[%s7 + $0x1f0] sm:$0xff]
      %v1215 = vld [vmem:[%s7 + $0x1f8] sm:$0xff]
      %1216 = vmatprep.subr.mxu0 %v1153
      %1217 = vmatpush1.msra.mxu0 %v1152
      %1218 = vmatprep.subr.mxu0 %v1155
      %1219 = vmatpush1.msra.mxu0 %v1154
      %1220 = vmatprep.subr.mxu0 %v1157
      %1221 = vmatpush1.msra.mxu0 %v1156
      %1222 = vmatprep.subr.mxu0 %v1159
      %1223 = vmatpush1.msra.mxu0 %v1158
      %1224 = vmatprep.subr.mxu0 %v1161
      %1225 = vmatpush1.msra.mxu0 %v1160
      %1226 = vmatprep.subr.mxu0 %v1163
      %1227 = vmatpush1.msra.mxu0 %v1162
      %1228 = vmatprep.subr.mxu0 %v1165
      %1229 = vmatpush1.msra.mxu0 %v1164
      %1230 = vmatprep.subr.mxu0 %v1167
      %1231 = vmatpush1.msra.mxu0 %v1166
      %1232 = vmatprep.subr.mxu0 %v1169
      %1233 = vmatpush1.msra.mxu0 %v1168
      %1234 = vmatprep.subr.mxu0 %v1171
      %1235 = vmatpush1.msra.mxu0 %v1170
      %1236 = vmatprep.subr.mxu0 %v1173
      %1237 = vmatpush1.msra.mxu0 %v1172
      %1238 = vmatprep.subr.mxu0 %v1175
      %1239 = vmatpush1.msra.mxu0 %v1174
      %1240 = vmatprep.subr.mxu0 %v1177
      %1241 = vmatpush1.msra.mxu0 %v1176
      %1242 = vmatprep.subr.mxu0 %v1179
      %1243 = vmatpush1.msra.mxu0 %v1178
      %1244 = vmatprep.subr.mxu0 %v1181
      %1245 = vmatpush1.msra.mxu0 %v1180
      %1246 = vmatprep.subr.mxu0 %v1183
      %1247 = vmatpush1.msra.mxu0 %v1182
      %1248 = vmatprep.subr.mxu0 %v1185
      %1249 = vmatpush1.msra.mxu0 %v1184
      %1250 = vmatprep.subr.mxu0 %v1187
      %1251 = vmatpush1.msra.mxu0 %v1186
      %1252 = vmatprep.subr.mxu0 %v1189
      %1253 = vmatpush1.msra.mxu0 %v1188
      %1254 = vmatprep.subr.mxu0 %v1191
      %1255 = vmatpush1.msra.mxu0 %v1190
      %1256 = vmatprep.subr.mxu0 %v1193
      %1257 = vmatpush1.msra.mxu0 %v1192
      %1258 = vmatprep.subr.mxu0 %v1195
      %1259 = vmatpush1.msra.mxu0 %v1194
      %1260 = vmatprep.subr.mxu0 %v1197
      %1261 = vmatpush1.msra.mxu0 %v1196
      %1262 = vmatprep.subr.mxu0 %v1199
      %1263 = vmatpush1.msra.mxu0 %v1198
      %1264 = vmatprep.subr.mxu0 %v1201
      %1265 = vmatpush1.msra.mxu0 %v1200
      %1266 = vmatprep.subr.mxu0 %v1203
      %1267 = vmatpush1.msra.mxu0 %v1202
      %1268 = vmatprep.subr.mxu0 %v1205
      %1269 = vmatpush1.msra.mxu0 %v1204
      %1270 = vmatprep.subr.mxu0 %v1207
      %1271 = vmatpush1.msra.mxu0 %v1206
      %1272 = vmatprep.subr.mxu0 %v1209
      %1273 = vmatpush1.msra.mxu0 %v1208
      %1274 = vmatprep.subr.mxu0 %v1211
      %1275 = vmatpush1.msra.mxu0 %v1210
      %1276 = vmatprep.subr.mxu0 %v1213
      %1277 = vmatpush1.msra.mxu0 %v1212
      %1278 = vmatprep.subr.mxu0 %v1215
      %1279 = vmatpush1.msra.mxu0 %v1214
      %1280 = vmatprep.mubr.f32.mxu0 %v1149
      %1281 = vmatmul.mubr.f32.gmra.mrb[0].mxu0 %v1148
      %v1282 = vpop.f32.mrb[0].mxu0
      %v1283 = vadd.f32 0.0, %v1282
      %v1284 = vpop.f32.mrb[0].mxu0
      %v1285 = vadd.f32 0.0, %v1284
      %1286 = vmatprep.mubr.f32.mxu0 %v1151
      %1287 = vmatmul.mubr.f32.gmra.mrb[0].mxu0 %v1150
      %v1288 = vpop.f32.mrb[0].mxu0
      %v1289 = vadd.f32 0.0, %v1288
      %v1290 = vpop.f32.mrb[0].mxu0
      %v1291 = vadd.f32 0.0, %v1290
      %1292 = vdwg.mxu0
      %v1293 = vadd.f32 %v764, %v1283
      %v1294 = vadd.f32 %v765, %v1285
      %v1295 = vadd.f32 %v766, %v1289
      %v1296 = vadd.f32 %v767, %v1291
      %v1298 = vlaneseq
      %v1299 = vshrl.u32 %v1298, 7
      %v1300 = vsub.s32 0, %v1299
      %v1301 = vrot.slane %v608, %v1300
      %v1302 = vlaneseq
      %v1303 = vshrl.u32 %v1302, 7
      %v1304 = vsub.s32 1, %v1303
      %v1305 = vrot.slane %v608, %v1304
      %v1308 = vadd.f32 %v1293, %v1301
      %v1309 = vadd.f32 %v1294, %v1305
      %v1310 = vadd.f32 %v1295, %v1301
      %v1311 = vadd.f32 %v1296, %v1305
      %v1312 = vld [vmem:[%s1 + $0x5] sm:$0x1]
      %v1313 = vld [vmem:[%s1 + $0x6] sm:$0x1]
      %s1314 = scalar_lea.vmem %s2, 6
      %v1315 = vld [vmem:[%s1314] ss:$8 sm:$0x3]
      %s1316 = scalar_lea.vmem %s2, 7
      %v1317 = vld [vmem:[%s1316] ss:$8 sm:$0x3]
      %s1318 = scalar_lea.vmem %s2, 16
      %v1319 = vld [vmem:[%s1318] ss:$8 sm:$0x3]
      %s1320 = scalar_lea.vmem %s2, 17
      %v1321 = vld [vmem:[%s1320] ss:$8 sm:$0x3]
      %s1322 = scalar_lea.vmem %s2, 18
      %v1323 = vld [vmem:[%s1322] ss:$8 sm:$0x3]
      %v1324 = vlaneseq
      %v1325 = vshrl.u32 %v1324, 7
      %v1326 = vsub.s32 0, %v1325
      %v1327 = vrot.slane %v1312, %v1326
      %v1328 = vmul.f32 %v637, %v1327
      %v1329 = vmul.f32 %v638, %v1327
      %v1330 = vlaneseq
      %v1331 = vshrl.u32 %v1330, 7
      %v1332 = vsub.s32 0, %v1331
      %v1333 = vrot.slane %v1313, %v1332
      %v1334 = vadd.f32 %v1328, %v1333
      %v1335 = vadd.f32 %v1329, %v1333
      %v1336 = vld [vmem:[%s8] sm:$0xff]
      %v1337 = vld [vmem:[%s8 + $0x8] sm:$0xff]
      %v1338 = vld [vmem:[%s8 + $0x10] sm:$0xff]
      %v1339 = vld [vmem:[%s8 + $0x18] sm:$0xff]
      %v1340 = vld [vmem:[%s8 + $0x20] sm:$0xff]
      %v1341 = vld [vmem:[%s8 + $0x28] sm:$0xff]
      %v1342 = vld [vmem:[%s8 + $0x30] sm:$0xff]
      %v1343 = vld [vmem:[%s8 + $0x38] sm:$0xff]
      %v1345 = vlaneseq
      %v1346 = vshrl.u32 %v1345, 7
      %v1347 = vsub.s32 0, %v1346
      %v1348 = vrot.slane %v1315, %v1347
      %v1349 = vlaneseq
      %v1350 = vshrl.u32 %v1349, 7
      %v1351 = vsub.s32 1, %v1350
      %v1352 = vrot.slane %v1315, %v1351
      %v1356 = vsel %vm550, %v1334, 0
      %v1359 = vsel %vm550, %v1335, 0
      %1361 = vmatprep.subr.mxu0 %v1337
      %1362 = vmatpush1.msra.mxu0 %v1336
      %1363 = vmatprep.subr.mxu0 %v1339
      %1364 = vmatpush1.msra.mxu0 %v1338
      %1365 = vmatprep.subr.mxu0 %v1341
      %1366 = vmatpush1.msra.mxu0 %v1340
      %1367 = vmatprep.subr.mxu0 %v1343
      %1368 = vmatpush1.msra.mxu0 %v1342
      %1369 = vmatprep.subr.mxu0 0.0
      %1370 = vmatpush1.msra.mxu0 0.0
      %1371 = vmatprep.subr.mxu0 0.0
      %1372 = vmatpush1.msra.mxu0 0.0
      %1373 = vmatprep.subr.mxu0 0.0
      %1374 = vmatpush1.msra.mxu0 0.0
      %1375 = vmatprep.subr.mxu0 0.0
      %1376 = vmatpush1.msra.mxu0 0.0
      %1377 = vmatprep.subr.mxu0 0.0
      %1378 = vmatpush1.msra.mxu0 0.0
      %1379 = vmatprep.subr.mxu0 0.0
      %1380 = vmatpush1.msra.mxu0 0.0
      %1381 = vmatprep.subr.mxu0 0.0
      %1382 = vmatpush1.msra.mxu0 0.0
      %1383 = vmatprep.subr.mxu0 0.0
      %1384 = vmatpush1.msra.mxu0 0.0
      %1385 = vmatprep.subr.mxu0 0.0
      %1386 = vmatpush1.msra.mxu0 0.0
      %1387 = vmatprep.subr.mxu0 0.0
      %1388 = vmatpush1.msra.mxu0 0.0
      %1389 = vmatprep.subr.mxu0 0.0
      %1390 = vmatpush1.msra.mxu0 0.0
      %1391 = vmatprep.subr.mxu0 0.0
      %1392 = vmatpush1.msra.mxu0 0.0
      %1393 = vmatprep.subr.mxu0 0.0
      %1394 = vmatpush1.msra.mxu0 0.0
      %1395 = vmatprep.subr.mxu0 0.0
      %1396 = vmatpush1.msra.mxu0 0.0
      %1397 = vmatprep.subr.mxu0 0.0
      %1398 = vmatpush1.msra.mxu0 0.0
      %1399 = vmatprep.subr.mxu0 0.0
      %1400 = vmatpush1.msra.mxu0 0.0
      %1401 = vmatprep.subr.mxu0 0.0
      %1402 = vmatpush1.msra.mxu0 0.0
      %1403 = vmatprep.subr.mxu0 0.0
      %1404 = vmatpush1.msra.mxu0 0.0
      %1405 = vmatprep.subr.mxu0 0.0
      %1406 = vmatpush1.msra.mxu0 0.0
      %1407 = vmatprep.subr.mxu0 0.0
      %1408 = vmatpush1.msra.mxu0 0.0
      %1409 = vmatprep.subr.mxu0 0.0
      %1410 = vmatpush1.msra.mxu0 0.0
      %1411 = vmatprep.subr.mxu0 0.0
      %1412 = vmatpush1.msra.mxu0 0.0
      %1413 = vmatprep.subr.mxu0 0.0
      %1414 = vmatpush1.msra.mxu0 0.0
      %1415 = vmatprep.subr.mxu0 0.0
      %1416 = vmatpush1.msra.mxu0 0.0
      %1417 = vmatprep.subr.mxu0 0.0
      %1418 = vmatpush1.msra.mxu0 0.0
      %1419 = vmatprep.subr.mxu0 0.0
      %1420 = vmatpush1.msra.mxu0 0.0
      %1421 = vmatprep.subr.mxu0 0.0
      %1422 = vmatpush1.msra.mxu0 0.0
      %1423 = vmatprep.subr.mxu0 0.0
      %1424 = vmatpush1.msra.mxu0 0.0
      %1425 = vmatprep.mubr.f32.mxu0 0.0
      %1426 = vmatmul.mubr.f32.gmra.mrb[0].mxu0 %v1356
      %v1427 = vpop.f32.mrb[0].mxu0
      %v1428 = vadd.f32 %v1348, %v1427
      %v1429 = vpop.f32.mrb[0].mxu0
      %v1430 = vadd.f32 %v1352, %v1429
      %1431 = vmatprep.mubr.f32.mxu0 0.0
      %1432 = vmatmul.mubr.f32.gmra.mrb[0].mxu0 %v1359
      %v1433 = vpop.f32.mrb[0].mxu0
      %v1434 = vadd.f32 %v1348, %v1433
      %v1435 = vpop.f32.mrb[0].mxu0
      %v1436 = vadd.f32 %v1352, %v1435
      %1437 = vdwg.mxu0
      %v1438 = vadd.f32 %v1308, %v1428
      %v1439 = vadd.f32 %v1309, %v1430
      %v1440 = vadd.f32 %v1310, %v1434
      %v1441 = vadd.f32 %v1311, %v1436
      %1442 = vmatprep.subr.mxu0 %v393
      %1443 = vmatpush1.msra.mxu0 %v392
      %1444 = vmatprep.subr.mxu0 %v395
      %1445 = vmatpush1.msra.mxu0 %v394
      %1446 = vmatprep.subr.mxu0 %v397
      %1447 = vmatpush1.msra.mxu0 %v396
      %1448 = vmatprep.subr.mxu0 %v399
      %1449 = vmatpush1.msra.mxu0 %v398
      %1450 = vmatprep.subr.mxu0 %v401
      %1451 = vmatpush1.msra.mxu0 %v400
      %1452 = vmatprep.subr.mxu0 %v403
      %1453 = vmatpush1.msra.mxu0 %v402
      %1454 = vmatprep.subr.mxu0 %v405
      %1455 = vmatpush1.msra.mxu0 %v404
      %1456 = vmatprep.subr.mxu0 %v407
      %1457 = vmatpush1.msra.mxu0 %v406
      %1458 = vmatprep.subr.mxu0 %v409
      %1459 = vmatpush1.msra.mxu0 %v408
      %1460 = vmatprep.subr.mxu0 %v411
      %1461 = vmatpush1.msra.mxu0 %v410
      %1462 = vmatprep.subr.mxu0 %v413
      %1463 = vmatpush1.msra.mxu0 %v412
      %1464 = vmatprep.subr.mxu0 %v415
      %1465 = vmatpush1.msra.mxu0 %v414
      %1466 = vmatprep.subr.mxu0 %v417
      %1467 = vmatpush1.msra.mxu0 %v416
      %1468 = vmatprep.subr.mxu0 %v419
      %1469 = vmatpush1.msra.mxu0 %v418
      %1470 = vmatprep.subr.mxu0 %v421
      %1471 = vmatpush1.msra.mxu0 %v420
      %1472 = vmatprep.subr.mxu0 %v423
      %1473 = vmatpush1.msra.mxu0 %v422
      %1474 = vmatprep.subr.mxu0 %v425
      %1475 = vmatpush1.msra.mxu0 %v424
      %1476 = vmatprep.subr.mxu0 %v427
      %1477 = vmatpush1.msra.mxu0 %v426
      %1478 = vmatprep.subr.mxu0 %v429
      %1479 = vmatpush1.msra.mxu0 %v428
      %1480 = vmatprep.subr.mxu0 %v431
      %1481 = vmatpush1.msra.mxu0 %v430
      %1482 = vmatprep.subr.mxu0 %v433
      %1483 = vmatpush1.msra.mxu0 %v432
      %1484 = vmatprep.subr.mxu0 %v435
      %1485 = vmatpush1.msra.mxu0 %v434
      %1486 = vmatprep.subr.mxu0 %v437
      %1487 = vmatpush1.msra.mxu0 %v436
      %1488 = vmatprep.subr.mxu0 %v439
      %1489 = vmatpush1.msra.mxu0 %v438
      %1490 = vmatprep.subr.mxu0 %v441
      %1491 = vmatpush1.msra.mxu0 %v440
      %1492 = vmatprep.subr.mxu0 %v443
      %1493 = vmatpush1.msra.mxu0 %v442
      %1494 = vmatprep.subr.mxu0 %v445
      %1495 = vmatpush1.msra.mxu0 %v444
      %1496 = vmatprep.subr.mxu0 %v447
      %1497 = vmatpush1.msra.mxu0 %v446
      %1498 = vmatprep.subr.mxu0 %v449
      %1499 = vmatpush1.msra.mxu0 %v448
      %1500 = vmatprep.subr.mxu0 %v451
      %1501 = vmatpush1.msra.mxu0 %v450
      %1502 = vmatprep.subr.mxu0 %v453
      %1503 = vmatpush1.msra.mxu0 %v452
      %1504 = vmatprep.subr.mxu0 %v455
      %1505 = vmatpush1.msra.mxu0 %v454
      %1506 = vmatprep.mubr.f32.mxu0 %v1439
      %1507 = vmatmul.mubr.f32.gmra.mrb[0].mxu0 %v1438
      %v1508 = vpop.f32.mrb[0].mxu0
      %v1509 = vadd.f32 0.0, %v1508
      %v1510 = vpop.f32.mrb[0].mxu0
      %v1511 = vadd.f32 0.0, %v1510
      %1512 = vmatprep.mubr.f32.mxu0 %v1441
      %1513 = vmatmul.mubr.f32.gmra.mrb[0].mxu0 %v1440
      %v1514 = vpop.f32.mrb[0].mxu0
      %v1515 = vadd.f32 0.0, %v1514
      %v1516 = vpop.f32.mrb[0].mxu0
      %v1517 = vadd.f32 0.0, %v1516
      %1518 = vdwg.mxu0
      %v1519 = vmul.f32 %v1438, %v1438
      %v1520 = vmul.f32 %v1439, %v1439
      %v1521 = vmul.f32 %v1440, %v1440
      %v1522 = vmul.f32 %v1441, %v1441
      %1523 = vmatprep.subr.mxu0 %v393
      %1524 = vmatpush1.msra.mxu0 %v392
      %1525 = vmatprep.subr.mxu0 %v395
      %1526 = vmatpush1.msra.mxu0 %v394
      %1527 = vmatprep.subr.mxu0 %v397
      %1528 = vmatpush1.msra.mxu0 %v396
      %1529 = vmatprep.subr.mxu0 %v399
      %1530 = vmatpush1.msra.mxu0 %v398
      %1531 = vmatprep.subr.mxu0 %v401
      %1532 = vmatpush1.msra.mxu0 %v400
      %1533 = vmatprep.subr.mxu0 %v403
      %1534 = vmatpush1.msra.mxu0 %v402
      %1535 = vmatprep.subr.mxu0 %v405
      %1536 = vmatpush1.msra.mxu0 %v404
      %1537 = vmatprep.subr.mxu0 %v407
      %1538 = vmatpush1.msra.mxu0 %v406
      %1539 = vmatprep.subr.mxu0 %v409
      %1540 = vmatpush1.msra.mxu0 %v408
      %1541 = vmatprep.subr.mxu0 %v411
      %1542 = vmatpush1.msra.mxu0 %v410
      %1543 = vmatprep.subr.mxu0 %v413
      %1544 = vmatpush1.msra.mxu0 %v412
      %1545 = vmatprep.subr.mxu0 %v415
      %1546 = vmatpush1.msra.mxu0 %v414
      %1547 = vmatprep.subr.mxu0 %v417
      %1548 = vmatpush1.msra.mxu0 %v416
      %1549 = vmatprep.subr.mxu0 %v419
      %1550 = vmatpush1.msra.mxu0 %v418
      %1551 = vmatprep.subr.mxu0 %v421
      %1552 = vmatpush1.msra.mxu0 %v420
      %1553 = vmatprep.subr.mxu0 %v423
      %1554 = vmatpush1.msra.mxu0 %v422
      %1555 = vmatprep.subr.mxu0 %v425
      %1556 = vmatpush1.msra.mxu0 %v424
      %1557 = vmatprep.subr.mxu0 %v427
      %1558 = vmatpush1.msra.mxu0 %v426
      %1559 = vmatprep.subr.mxu0 %v429
      %1560 = vmatpush1.msra.mxu0 %v428
      %1561 = vmatprep.subr.mxu0 %v431
      %1562 = vmatpush1.msra.mxu0 %v430
      %1563 = vmatprep.subr.mxu0 %v433
      %1564 = vmatpush1.msra.mxu0 %v432
      %1565 = vmatprep.subr.mxu0 %v435
      %1566 = vmatpush1.msra.mxu0 %v434
      %1567 = vmatprep.subr.mxu0 %v437
      %1568 = vmatpush1.msra.mxu0 %v436
      %1569 = vmatprep.subr.mxu0 %v439
      %1570 = vmatpush1.msra.mxu0 %v438
      %1571 = vmatprep.subr.mxu0 %v441
      %1572 = vmatpush1.msra.mxu0 %v440
      %1573 = vmatprep.subr.mxu0 %v443
      %1574 = vmatpush1.msra.mxu0 %v442
      %1575 = vmatprep.subr.mxu0 %v445
      %1576 = vmatpush1.msra.mxu0 %v444
      %1577 = vmatprep.subr.mxu0 %v447
      %1578 = vmatpush1.msra.mxu0 %v446
      %1579 = vmatprep.subr.mxu0 %v449
      %1580 = vmatpush1.msra.mxu0 %v448
      %1581 = vmatprep.subr.mxu0 %v451
      %1582 = vmatpush1.msra.mxu0 %v450
      %1583 = vmatprep.subr.mxu0 %v453
      %1584 = vmatpush1.msra.mxu0 %v452
      %1585 = vmatprep.subr.mxu0 %v455
      %1586 = vmatpush1.msra.mxu0 %v454
      %1587 = vmatprep.mubr.f32.mxu0 %v1520
      %1588 = vmatmul.mubr.f32.gmra.mrb[0].mxu0 %v1519
      %v1589 = vpop.f32.mrb[0].mxu0
      %v1590 = vadd.f32 0.0, %v1589
      %v1591 = vpop.f32.mrb[0].mxu0
      %v1592 = vadd.f32 0.0, %v1591
      %1593 = vmatprep.mubr.f32.mxu0 %v1522
      %1594 = vmatmul.mubr.f32.gmra.mrb[0].mxu0 %v1521
      %v1595 = vpop.f32.mrb[0].mxu0
      %v1596 = vadd.f32 0.0, %v1595
      %v1597 = vpop.f32.mrb[0].mxu0
      %v1598 = vadd.f32 0.0, %v1597
      %1599 = vdwg.mxu0
      %v1600 = vsub.f32 %v1438, %v1509
      %v1601 = vsub.f32 %v1439, %v1511
      %v1602 = vsub.f32 %v1440, %v1515
      %v1603 = vsub.f32 %v1441, %v1517
      %v1604 = vmul.f32 %v1509, %v1509
      %v1605 = vmul.f32 %v1511, %v1511
      %v1606 = vmul.f32 %v1515, %v1515
      %v1607 = vmul.f32 %v1517, %v1517
      %v1608 = vsub.f32 %v1590, %v1604
      %v1609 = vsub.f32 %v1592, %v1605
      %v1610 = vsub.f32 %v1596, %v1606
      %v1611 = vsub.f32 %v1598, %v1607
      %v1612 = vadd.f32 %v1608, 1e-05
      %v1613 = vadd.f32 %v1609, 1e-05
      %v1614 = vadd.f32 %v1610, 1e-05
      %v1615 = vadd.f32 %v1611, 1e-05
      %v1616 = vrsqrt.pop %v1612
      %v1617 = vrsqrt.pop %v1613
      %v1618 = vrsqrt.pop %v1614
      %v1619 = vrsqrt.pop %v1615
      %v1620 = vmul.f32 %v1600, %v1616
      %v1621 = vmul.f32 %v1601, %v1617
      %v1622 = vmul.f32 %v1602, %v1618
      %v1623 = vmul.f32 %v1603, %v1619
      %v1625 = vlaneseq
      %v1626 = vshrl.u32 %v1625, 7
      %v1627 = vsub.s32 0, %v1626
      %v1628 = vrot.slane %v1317, %v1627
      %v1629 = vlaneseq
      %v1630 = vshrl.u32 %v1629, 7
      %v1631 = vsub.s32 1, %v1630
      %v1632 = vrot.slane %v1317, %v1631
      %v1635 = vmul.f32 %v1620, %v1628
      %v1636 = vmul.f32 %v1621, %v1632
      %v1637 = vmul.f32 %v1622, %v1628
      %v1638 = vmul.f32 %v1623, %v1632
      %v1640 = vlaneseq
      %v1641 = vshrl.u32 %v1640, 7
      %v1642 = vsub.s32 0, %v1641
      %v1643 = vrot.slane %v1319, %v1642
      %v1644 = vlaneseq
      %v1645 = vshrl.u32 %v1644, 7
      %v1646 = vsub.s32 1, %v1645
      %v1647 = vrot.slane %v1319, %v1646
      %v1650 = vadd.f32 %v1635, %v1643
      %v1651 = vadd.f32 %v1636, %v1647
      %v1652 = vadd.f32 %v1637, %v1643
      %v1653 = vadd.f32 %v1638, %v1647
      %v1654 = vld [vmem:[%s9] sm:$0xff]
      %v1655 = vld [vmem:[%s9 + $0x8] sm:$0xff]
      %v1656 = vld [vmem:[%s9 + $0x10] sm:$0xff]
      %v1657 = vld [vmem:[%s9 + $0x18] sm:$0xff]
      %v1658 = vld [vmem:[%s9 + $0x20] sm:$0xff]
      %v1659 = vld [vmem:[%s9 + $0x28] sm:$0xff]
      %v1660 = vld [vmem:[%s9 + $0x30] sm:$0xff]
      %v1661 = vld [vmem:[%s9 + $0x38] sm:$0xff]
      %v1662 = vld [vmem:[%s9 + $0x40] sm:$0xff]
      %v1663 = vld [vmem:[%s9 + $0x48] sm:$0xff]
      %v1664 = vld [vmem:[%s9 + $0x50] sm:$0xff]
      %v1665 = vld [vmem:[%s9 + $0x58] sm:$0xff]
      %v1666 = vld [vmem:[%s9 + $0x60] sm:$0xff]
      %v1667 = vld [vmem:[%s9 + $0x68] sm:$0xff]
      %v1668 = vld [vmem:[%s9 + $0x70] sm:$0xff]
      %v1669 = vld [vmem:[%s9 + $0x78] sm:$0xff]
      %v1670 = vld [vmem:[%s9 + $0x80] sm:$0xff]
      %v1671 = vld [vmem:[%s9 + $0x88] sm:$0xff]
      %v1672 = vld [vmem:[%s9 + $0x90] sm:$0xff]
      %v1673 = vld [vmem:[%s9 + $0x98] sm:$0xff]
      %v1674 = vld [vmem:[%s9 + $0xa0] sm:$0xff]
      %v1675 = vld [vmem:[%s9 + $0xa8] sm:$0xff]
      %v1676 = vld [vmem:[%s9 + $0xb0] sm:$0xff]
      %v1677 = vld [vmem:[%s9 + $0xb8] sm:$0xff]
      %v1678 = vld [vmem:[%s9 + $0xc0] sm:$0xff]
      %v1679 = vld [vmem:[%s9 + $0xc8] sm:$0xff]
      %v1680 = vld [vmem:[%s9 + $0xd0] sm:$0xff]
      %v1681 = vld [vmem:[%s9 + $0xd8] sm:$0xff]
      %v1682 = vld [vmem:[%s9 + $0xe0] sm:$0xff]
      %v1683 = vld [vmem:[%s9 + $0xe8] sm:$0xff]
      %v1684 = vld [vmem:[%s9 + $0xf0] sm:$0xff]
      %v1685 = vld [vmem:[%s9 + $0xf8] sm:$0xff]
      %v1686 = vld [vmem:[%s9 + $0x100] sm:$0xff]
      %v1687 = vld [vmem:[%s9 + $0x108] sm:$0xff]
      %v1688 = vld [vmem:[%s9 + $0x110] sm:$0xff]
      %v1689 = vld [vmem:[%s9 + $0x118] sm:$0xff]
      %v1690 = vld [vmem:[%s9 + $0x120] sm:$0xff]
      %v1691 = vld [vmem:[%s9 + $0x128] sm:$0xff]
      %v1692 = vld [vmem:[%s9 + $0x130] sm:$0xff]
      %v1693 = vld [vmem:[%s9 + $0x138] sm:$0xff]
      %v1694 = vld [vmem:[%s9 + $0x140] sm:$0xff]
      %v1695 = vld [vmem:[%s9 + $0x148] sm:$0xff]
      %v1696 = vld [vmem:[%s9 + $0x150] sm:$0xff]
      %v1697 = vld [vmem:[%s9 + $0x158] sm:$0xff]
      %v1698 = vld [vmem:[%s9 + $0x160] sm:$0xff]
      %v1699 = vld [vmem:[%s9 + $0x168] sm:$0xff]
      %v1700 = vld [vmem:[%s9 + $0x170] sm:$0xff]
      %v1701 = vld [vmem:[%s9 + $0x178] sm:$0xff]
      %v1702 = vld [vmem:[%s9 + $0x180] sm:$0xff]
      %v1703 = vld [vmem:[%s9 + $0x188] sm:$0xff]
      %v1704 = vld [vmem:[%s9 + $0x190] sm:$0xff]
      %v1705 = vld [vmem:[%s9 + $0x198] sm:$0xff]
      %v1706 = vld [vmem:[%s9 + $0x1a0] sm:$0xff]
      %v1707 = vld [vmem:[%s9 + $0x1a8] sm:$0xff]
      %v1708 = vld [vmem:[%s9 + $0x1b0] sm:$0xff]
      %v1709 = vld [vmem:[%s9 + $0x1b8] sm:$0xff]
      %v1710 = vld [vmem:[%s9 + $0x1c0] sm:$0xff]
      %v1711 = vld [vmem:[%s9 + $0x1c8] sm:$0xff]
      %v1712 = vld [vmem:[%s9 + $0x1d0] sm:$0xff]
      %v1713 = vld [vmem:[%s9 + $0x1d8] sm:$0xff]
      %v1714 = vld [vmem:[%s9 + $0x1e0] sm:$0xff]
      %v1715 = vld [vmem:[%s9 + $0x1e8] sm:$0xff]
      %v1716 = vld [vmem:[%s9 + $0x1f0] sm:$0xff]
      %v1717 = vld [vmem:[%s9 + $0x1f8] sm:$0xff]
      %v1719 = vlaneseq
      %v1720 = vshrl.u32 %v1719, 7
      %v1721 = vsub.s32 0, %v1720
      %v1722 = vrot.slane %v1321, %v1721
      %v1723 = vlaneseq
      %v1724 = vshrl.u32 %v1723, 7
      %v1725 = vsub.s32 1, %v1724
      %v1726 = vrot.slane %v1321, %v1725
      %1729 = vmatprep.subr.mxu0 %v1655
      %1730 = vmatpush1.msra.mxu0 %v1654
      %1731 = vmatprep.subr.mxu0 %v1657
      %1732 = vmatpush1.msra.mxu0 %v1656
      %1733 = vmatprep.subr.mxu0 %v1659
      %1734 = vmatpush1.msra.mxu0 %v1658
      %1735 = vmatprep.subr.mxu0 %v1661
      %1736 = vmatpush1.msra.mxu0 %v1660
      %1737 = vmatprep.subr.mxu0 %v1663
      %1738 = vmatpush1.msra.mxu0 %v1662
      %1739 = vmatprep.subr.mxu0 %v1665
      %1740 = vmatpush1.msra.mxu0 %v1664
      %1741 = vmatprep.subr.mxu0 %v1667
      %1742 = vmatpush1.msra.mxu0 %v1666
      %1743 = vmatprep.subr.mxu0 %v1669
      %1744 = vmatpush1.msra.mxu0 %v1668
      %1745 = vmatprep.subr.mxu0 %v1671
      %1746 = vmatpush1.msra.mxu0 %v1670
      %1747 = vmatprep.subr.mxu0 %v1673
      %1748 = vmatpush1.msra.mxu0 %v1672
      %1749 = vmatprep.subr.mxu0 %v1675
      %1750 = vmatpush1.msra.mxu0 %v1674
      %1751 = vmatprep.subr.mxu0 %v1677
      %1752 = vmatpush1.msra.mxu0 %v1676
      %1753 = vmatprep.subr.mxu0 %v1679
      %1754 = vmatpush1.msra.mxu0 %v1678
      %1755 = vmatprep.subr.mxu0 %v1681
      %1756 = vmatpush1.msra.mxu0 %v1680
      %1757 = vmatprep.subr.mxu0 %v1683
      %1758 = vmatpush1.msra.mxu0 %v1682
      %1759 = vmatprep.subr.mxu0 %v1685
      %1760 = vmatpush1.msra.mxu0 %v1684
      %1761 = vmatprep.subr.mxu0 %v1687
      %1762 = vmatpush1.msra.mxu0 %v1686
      %1763 = vmatprep.subr.mxu0 %v1689
      %1764 = vmatpush1.msra.mxu0 %v1688
      %1765 = vmatprep.subr.mxu0 %v1691
      %1766 = vmatpush1.msra.mxu0 %v1690
      %1767 = vmatprep.subr.mxu0 %v1693
      %1768 = vmatpush1.msra.mxu0 %v1692
      %1769 = vmatprep.subr.mxu0 %v1695
      %1770 = vmatpush1.msra.mxu0 %v1694
      %1771 = vmatprep.subr.mxu0 %v1697
      %1772 = vmatpush1.msra.mxu0 %v1696
      %1773 = vmatprep.subr.mxu0 %v1699
      %1774 = vmatpush1.msra.mxu0 %v1698
      %1775 = vmatprep.subr.mxu0 %v1701
      %1776 = vmatpush1.msra.mxu0 %v1700
      %1777 = vmatprep.subr.mxu0 %v1703
      %1778 = vmatpush1.msra.mxu0 %v1702
      %1779 = vmatprep.subr.mxu0 %v1705
      %1780 = vmatpush1.msra.mxu0 %v1704
      %1781 = vmatprep.subr.mxu0 %v1707
      %1782 = vmatpush1.msra.mxu0 %v1706
      %1783 = vmatprep.subr.mxu0 %v1709
      %1784 = vmatpush1.msra.mxu0 %v1708
      %1785 = vmatprep.subr.mxu0 %v1711
      %1786 = vmatpush1.msra.mxu0 %v1710
      %1787 = vmatprep.subr.mxu0 %v1713
      %1788 = vmatpush1.msra.mxu0 %v1712
      %1789 = vmatprep.subr.mxu0 %v1715
      %1790 = vmatpush1.msra.mxu0 %v1714
      %1791 = vmatprep.subr.mxu0 %v1717
      %1792 = vmatpush1.msra.mxu0 %v1716
      %1793 = vmatprep.mubr.f32.mxu0 %v1651
      %1794 = vmatmul.mubr.f32.gmra.mrb[0].mxu0 %v1650
      %v1795 = vpop.f32.mrb[0].mxu0
      %v1796 = vadd.f32 %v1722, %v1795
      %v1797 = vpop.f32.mrb[0].mxu0
      %v1798 = vadd.f32 %v1726, %v1797
      %1799 = vmatprep.mubr.f32.mxu0 %v1653
      %1800 = vmatmul.mubr.f32.gmra.mrb[0].mxu0 %v1652
      %v1801 = vpop.f32.mrb[0].mxu0
      %v1802 = vadd.f32 %v1722, %v1801
      %v1803 = vpop.f32.mrb[0].mxu0
      %v1804 = vadd.f32 %v1726, %v1803
      %1805 = vdwg.mxu0
      %v1806 = vmul.f32 %v1796, 0.5
      %v1807 = vmul.f32 %v1798, 0.5
      %v1808 = vmul.f32 %v1802, 0.5
      %v1809 = vmul.f32 %v1804, 0.5
      %v1810 = vmul.f32 %v1796, 0.70710677
      %v1811 = vmul.f32 %v1798, 0.70710677
      %v1812 = vmul.f32 %v1802, 0.70710677
      %v1813 = vmul.f32 %v1804, 0.70710677
      %v1814 = verf.f32.pop %v1810
      %v1815 = verf.f32.pop %v1811
      %v1816 = verf.f32.pop %v1812
      %v1817 = verf.f32.pop %v1813
      %v1818 = vadd.f32 %v1814, 1.0
      %v1819 = vadd.f32 %v1815, 1.0
      %v1820 = vadd.f32 %v1816, 1.0
      %v1821 = vadd.f32 %v1817, 1.0
      %v1822 = vmul.f32 %v1806, %v1818
      %v1823 = vmul.f32 %v1807, %v1819
      %v1824 = vmul.f32 %v1808, %v1820
      %v1825 = vmul.f32 %v1809, %v1821
      %v1826 = vld [vmem:[%s10] sm:$0xff]
      %v1827 = vld [vmem:[%s10 + $0x8] sm:$0xff]
      %v1828 = vld [vmem:[%s10 + $0x10] sm:$0xff]
      %v1829 = vld [vmem:[%s10 + $0x18] sm:$0xff]
      %v1830 = vld [vmem:[%s10 + $0x20] sm:$0xff]
      %v1831 = vld [vmem:[%s10 + $0x28] sm:$0xff]
      %v1832 = vld [vmem:[%s10 + $0x30] sm:$0xff]
      %v1833 = vld [vmem:[%s10 + $0x38] sm:$0xff]
      %v1834 = vld [vmem:[%s10 + $0x40] sm:$0xff]
      %v1835 = vld [vmem:[%s10 + $0x48] sm:$0xff]
      %v1836 = vld [vmem:[%s10 + $0x50] sm:$0xff]
      %v1837 = vld [vmem:[%s10 + $0x58] sm:$0xff]
      %v1838 = vld [vmem:[%s10 + $0x60] sm:$0xff]
      %v1839 = vld [vmem:[%s10 + $0x68] sm:$0xff]
      %v1840 = vld [vmem:[%s10 + $0x70] sm:$0xff]
      %v1841 = vld [vmem:[%s10 + $0x78] sm:$0xff]
      %v1842 = vld [vmem:[%s10 + $0x80] sm:$0xff]
      %v1843 = vld [vmem:[%s10 + $0x88] sm:$0xff]
      %v1844 = vld [vmem:[%s10 + $0x90] sm:$0xff]
      %v1845 = vld [vmem:[%s10 + $0x98] sm:$0xff]
      %v1846 = vld [vmem:[%s10 + $0xa0] sm:$0xff]
      %v1847 = vld [vmem:[%s10 + $0xa8] sm:$0xff]
      %v1848 = vld [vmem:[%s10 + $0xb0] sm:$0xff]
      %v1849 = vld [vmem:[%s10 + $0xb8] sm:$0xff]
      %v1850 = vld [vmem:[%s10 + $0xc0] sm:$0xff]
      %v1851 = vld [vmem:[%s10 + $0xc8] sm:$0xff]
      %v1852 = vld [vmem:[%s10 + $0xd0] sm:$0xff]
      %v1853 = vld [vmem:[%s10 + $0xd8] sm:$0xff]
      %v1854 = vld [vmem:[%s10 + $0xe0] sm:$0xff]
      %v1855 = vld [vmem:[%s10 + $0xe8] sm:$0xff]
      %v1856 = vld [vmem:[%s10 + $0xf0] sm:$0xff]
      %v1857 = vld [vmem:[%s10 + $0xf8] sm:$0xff]
      %v1858 = vld [vmem:[%s10 + $0x100] sm:$0xff]
      %v1859 = vld [vmem:[%s10 + $0x108] sm:$0xff]
      %v1860 = vld [vmem:[%s10 + $0x110] sm:$0xff]
      %v1861 = vld [vmem:[%s10 + $0x118] sm:$0xff]
      %v1862 = vld [vmem:[%s10 + $0x120] sm:$0xff]
      %v1863 = vld [vmem:[%s10 + $0x128] sm:$0xff]
      %v1864 = vld [vmem:[%s10 + $0x130] sm:$0xff]
      %v1865 = vld [vmem:[%s10 + $0x138] sm:$0xff]
      %v1866 = vld [vmem:[%s10 + $0x140] sm:$0xff]
      %v1867 = vld [vmem:[%s10 + $0x148] sm:$0xff]
      %v1868 = vld [vmem:[%s10 + $0x150] sm:$0xff]
      %v1869 = vld [vmem:[%s10 + $0x158] sm:$0xff]
      %v1870 = vld [vmem:[%s10 + $0x160] sm:$0xff]
      %v1871 = vld [vmem:[%s10 + $0x168] sm:$0xff]
      %v1872 = vld [vmem:[%s10 + $0x170] sm:$0xff]
      %v1873 = vld [vmem:[%s10 + $0x178] sm:$0xff]
      %v1874 = vld [vmem:[%s10 + $0x180] sm:$0xff]
      %v1875 = vld [vmem:[%s10 + $0x188] sm:$0xff]
      %v1876 = vld [vmem:[%s10 + $0x190] sm:$0xff]
      %v1877 = vld [vmem:[%s10 + $0x198] sm:$0xff]
      %v1878 = vld [vmem:[%s10 + $0x1a0] sm:$0xff]
      %v1879 = vld [vmem:[%s10 + $0x1a8] sm:$0xff]
      %v1880 = vld [vmem:[%s10 + $0x1b0] sm:$0xff]
      %v1881 = vld [vmem:[%s10 + $0x1b8] sm:$0xff]
      %v1882 = vld [vmem:[%s10 + $0x1c0] sm:$0xff]
      %v1883 = vld [vmem:[%s10 + $0x1c8] sm:$0xff]
      %v1884 = vld [vmem:[%s10 + $0x1d0] sm:$0xff]
      %v1885 = vld [vmem:[%s10 + $0x1d8] sm:$0xff]
      %v1886 = vld [vmem:[%s10 + $0x1e0] sm:$0xff]
      %v1887 = vld [vmem:[%s10 + $0x1e8] sm:$0xff]
      %v1888 = vld [vmem:[%s10 + $0x1f0] sm:$0xff]
      %v1889 = vld [vmem:[%s10 + $0x1f8] sm:$0xff]
      %1890 = vmatprep.subr.mxu0 %v1827
      %1891 = vmatpush1.msra.mxu0 %v1826
      %1892 = vmatprep.subr.mxu0 %v1829
      %1893 = vmatpush1.msra.mxu0 %v1828
      %1894 = vmatprep.subr.mxu0 %v1831
      %1895 = vmatpush1.msra.mxu0 %v1830
      %1896 = vmatprep.subr.mxu0 %v1833
      %1897 = vmatpush1.msra.mxu0 %v1832
      %1898 = vmatprep.subr.mxu0 %v1835
      %1899 = vmatpush1.msra.mxu0 %v1834
      %1900 = vmatprep.subr.mxu0 %v1837
      %1901 = vmatpush1.msra.mxu0 %v1836
      %1902 = vmatprep.subr.mxu0 %v1839
      %1903 = vmatpush1.msra.mxu0 %v1838
      %1904 = vmatprep.subr.mxu0 %v1841
      %1905 = vmatpush1.msra.mxu0 %v1840
      %1906 = vmatprep.subr.mxu0 %v1843
      %1907 = vmatpush1.msra.mxu0 %v1842
      %1908 = vmatprep.subr.mxu0 %v1845
      %1909 = vmatpush1.msra.mxu0 %v1844
      %1910 = vmatprep.subr.mxu0 %v1847
      %1911 = vmatpush1.msra.mxu0 %v1846
      %1912 = vmatprep.subr.mxu0 %v1849
      %1913 = vmatpush1.msra.mxu0 %v1848
      %1914 = vmatprep.subr.mxu0 %v1851
      %1915 = vmatpush1.msra.mxu0 %v1850
      %1916 = vmatprep.subr.mxu0 %v1853
      %1917 = vmatpush1.msra.mxu0 %v1852
      %1918 = vmatprep.subr.mxu0 %v1855
      %1919 = vmatpush1.msra.mxu0 %v1854
      %1920 = vmatprep.subr.mxu0 %v1857
      %1921 = vmatpush1.msra.mxu0 %v1856
      %1922 = vmatprep.subr.mxu0 %v1859
      %1923 = vmatpush1.msra.mxu0 %v1858
      %1924 = vmatprep.subr.mxu0 %v1861
      %1925 = vmatpush1.msra.mxu0 %v1860
      %1926 = vmatprep.subr.mxu0 %v1863
      %1927 = vmatpush1.msra.mxu0 %v1862
      %1928 = vmatprep.subr.mxu0 %v1865
      %1929 = vmatpush1.msra.mxu0 %v1864
      %1930 = vmatprep.subr.mxu0 %v1867
      %1931 = vmatpush1.msra.mxu0 %v1866
      %1932 = vmatprep.subr.mxu0 %v1869
      %1933 = vmatpush1.msra.mxu0 %v1868
      %1934 = vmatprep.subr.mxu0 %v1871
      %1935 = vmatpush1.msra.mxu0 %v1870
      %1936 = vmatprep.subr.mxu0 %v1873
      %1937 = vmatpush1.msra.mxu0 %v1872
      %1938 = vmatprep.subr.mxu0 %v1875
      %1939 = vmatpush1.msra.mxu0 %v1874
      %1940 = vmatprep.subr.mxu0 %v1877
      %1941 = vmatpush1.msra.mxu0 %v1876
      %1942 = vmatprep.subr.mxu0 %v1879
      %1943 = vmatpush1.msra.mxu0 %v1878
      %1944 = vmatprep.subr.mxu0 %v1881
      %1945 = vmatpush1.msra.mxu0 %v1880
      %1946 = vmatprep.subr.mxu0 %v1883
      %1947 = vmatpush1.msra.mxu0 %v1882
      %1948 = vmatprep.subr.mxu0 %v1885
      %1949 = vmatpush1.msra.mxu0 %v1884
      %1950 = vmatprep.subr.mxu0 %v1887
      %1951 = vmatpush1.msra.mxu0 %v1886
      %1952 = vmatprep.subr.mxu0 %v1889
      %1953 = vmatpush1.msra.mxu0 %v1888
      %1954 = vmatprep.mubr.f32.mxu0 %v1823
      %1955 = vmatmul.mubr.f32.gmra.mrb[0].mxu0 %v1822
      %v1956 = vpop.f32.mrb[0].mxu0
      %v1957 = vadd.f32 0.0, %v1956
      %v1958 = vpop.f32.mrb[0].mxu0
      %v1959 = vadd.f32 0.0, %v1958
      %1960 = vmatprep.mubr.f32.mxu0 %v1825
      %1961 = vmatmul.mubr.f32.gmra.mrb[0].mxu0 %v1824
      %v1962 = vpop.f32.mrb[0].mxu0
      %v1963 = vadd.f32 0.0, %v1962
      %v1964 = vpop.f32.mrb[0].mxu0
      %v1965 = vadd.f32 0.0, %v1964
      %1966 = vdwg.mxu0
      %v1967 = vadd.f32 %v1438, %v1957
      %v1968 = vadd.f32 %v1439, %v1959
      %v1969 = vadd.f32 %v1440, %v1963
      %v1970 = vadd.f32 %v1441, %v1965
      %v1972 = vlaneseq
      %v1973 = vshrl.u32 %v1972, 7
      %v1974 = vsub.s32 0, %v1973
      %v1975 = vrot.slane %v1323, %v1974
      %v1976 = vlaneseq
      %v1977 = vshrl.u32 %v1976, 7
      %v1978 = vsub.s32 1, %v1977
      %v1979 = vrot.slane %v1323, %v1978
      %v1982 = vadd.f32 %v1967, %v1975
      %v1983 = vadd.f32 %v1968, %v1979
      %v1984 = vadd.f32 %v1969, %v1975
      %v1985 = vadd.f32 %v1970, %v1979
      %1986 = vst [vmem:[%s390] sm:$0xff] %v1982
      %1987 = vst [vmem:[%s390 + $0x8] sm:$0xff] %v1983
      %1988 = vst [vmem:[%s390 + $0x10] sm:$0xff] %v1984
      %1989 = vst [vmem:[%s390 + $0x18] sm:$0xff] %v1985
      %s1990 = smul.u32 2, %s22
      %p1991 = scmp.lt.s32.totalorder %s1990, 3
      %s1992 = scalar_select %p1991, %s1990, 3
      %s1993 = smul.addr %s1992, 2
      %s1994 = smul.addr %s1993, 8
      %s1995 = scalar_lea.vmem %s11, %s1994
      // Predicated region
      $region65: #{time_aggregator_forward.1} parent=63 // pred_check
        %p1996 = pneg %p276
      $region66: #{time_aggregator_forward.1} parent=63 // pred_check_branch
        %1998 = sbr.rel (%p1996) target = $region68
      $region67: #{time_aggregator_forward.1} parent=63 // pred_region
        %s1999 = smul.u32 2, %s22
      $region68: #{time_aggregator_forward.1} parent=63 // pred_fallthru
        _
    $region64: #{time_aggregator_forward.1} parent=5 // pred_fallthru
      _
    %p2000 = scmp.le.s32.totalorder 2, %s17
    // Predicated region
    $region69: #{time_aggregator_forward.1} parent=5 // pred_check
      %p2001 = pneg %p2000
    $region70: #{time_aggregator_forward.1} parent=5 // pred_check_branch
      %2003 = sbr.rel (%p2001) target = $region72
    $region71: #{time_aggregator_forward.1} parent=5 // pred_region
      %s2004 = ssub.s32 %s17, 2
      // Predicated region
      $region73: #{time_aggregator_forward.1} parent=71 // pred_check
        %p2005 = pneg %p282
      $region74: #{time_aggregator_forward.1} parent=71 // pred_check_branch
        %2007 = sbr.rel (%p2005) target = $region76
      $region75: #{time_aggregator_forward.1} parent=71 // pred_region
        %s2008 = smul.u32 2, %s23
        %p2009 = scmp.lt.s32.totalorder %s2008, 3
        %s2010 = scalar_select %p2009, %s2008, 3
        %s2011 = smul.addr %s2010, 2
        %s2012 = smul.addr %s2011, 8
        %s2013 = scalar_lea.vmem %s11, %s2012
      $region76: #{time_aggregator_forward.1} parent=71 // pred_fallthru
        _
    $region72: #{time_aggregator_forward.1} parent=5 // pred_fallthru
      _
  $region6: #{time_aggregator_forward.1} parent=0 // loop_footer
    %s21 = sadd.s32 1, %s17
  $region7: #{time_aggregator_forward.1} parent=0 // loop_footer_branch
    %16 = sbr.rel target = $region3
  $region8: #{time_aggregator_forward.1} parent=0 // loop_exit
    _

</llo_original>
